<compile_context>
chip_gen: v7x
topology: tpu7x:2x2x1
jax: 0.10.0
libtpu: 0.0.40
codegen_flags: <defaults>
</compile_context>

<pallas_src>
import functools

import jax
import jax.numpy as jnp
from jax.experimental import pallas as pl
from jax.experimental.pallas import tpu as pltpu

_LOGICAL_DIMS = [(784, 500), (500, 100), (100, 50), (50, 10)]
_D_IN = 784
_N_OUT = 10


def _round_up(v, m):
    return (v + m - 1) // m * m


# Padded (lane-dense) layer shapes: in-dim of layer i = padded out-dim of i-1.
_PADDED_DIMS = []
_prev = _D_IN
for _fi, _fo in _LOGICAL_DIMS:
    _po = _round_up(_fo, 128)
    _PADDED_DIMS.append((_prev, _po))
    _prev = _po
_OUT_PAD = _PADDED_DIMS[-1][1]  # 128


def _mlp_kernel(x_ref,
                w1_ref, b1_ref,
                w2_ref, b2_ref,
                w3_ref, b3_ref,
                w4_ref, b4_ref,
                o_ref):
    # One batch tile: x (TB, 784) @ VMEM-resident weights; f32 accumulate on MXU.
    x = x_ref[...]
    h = jnp.dot(x, w1_ref[...], preferred_element_type=jnp.float32) + b1_ref[...]
    h = jnp.maximum(h, 0.0).astype(w2_ref.dtype)
    h = jnp.dot(h, w2_ref[...], preferred_element_type=jnp.float32) + b2_ref[...]
    h = jnp.maximum(h, 0.0).astype(w3_ref.dtype)
    h = jnp.dot(h, w3_ref[...], preferred_element_type=jnp.float32) + b3_ref[...]
    h = jnp.maximum(h, 0.0).astype(w4_ref.dtype)
    out = jnp.dot(h, w4_ref[...], preferred_element_type=jnp.float32) + b4_ref[...]
    o_ref[...] = out.astype(o_ref.dtype)


def _pad_params(params, compute_dtype):
    """Zero-pad logical (in, out) weights / (1, out) biases to lane-dense shapes."""
    padded = []
    for i, ((fi, fo), (pi, po)) in enumerate(zip(_LOGICAL_DIMS, _PADDED_DIMS),
                                             start=1):
        w = params[f"w{i}"]  # (fi, fo), already transposed vs torch
        b = params[f"b{i}"]  # (1, fo)
        w = jnp.pad(w, ((0, pi - fi), (0, po - fo))).astype(compute_dtype)
        b = jnp.pad(b, ((0, 0), (0, po - fo))).astype(jnp.float32)  # added to f32 acc
        padded += [w, b]
    return padded


@functools.partial(jax.jit, static_argnames=("block_b", "compute_dtype"))
def mlp_forward(x, params, *, block_b=512, compute_dtype=jnp.float32):
    """x: (B, ...) -> flattened to (B, 784). Returns (B, 10) float32 logits."""
    x = x.reshape(x.shape[0], -1)  # matches torch's x.reshape(x.shape[0], -1)
    B = x.shape[0]

    # Batch tile: multiple of 8 (f32 sublane), capped at block_b rows.
    tb = min(block_b, _round_up(B, 8))
    b_pad = _round_up(B, tb)
    if b_pad != B:
        x = jnp.pad(x, ((0, b_pad - B), (0, 0)))  # padded rows dropped at the end
    x = x.astype(compute_dtype)

    pads = _pad_params(params, compute_dtype)

    grid = (b_pad // tb,)
    x_spec = pl.BlockSpec((tb, _D_IN), lambda i: (i, 0))
    out_spec = pl.BlockSpec((tb, _OUT_PAD), lambda i: (i, 0))
    # Weights/biases: full-array blocks with a constant block index -> DMA'd
    # once and VMEM-resident for the whole grid (ndim bound explicitly so the
    # closure is not late-binding).
    resident_specs = [
        pl.BlockSpec(p.shape, functools.partial(lambda nd, i: (0,) * nd, p.ndim))
        for p in pads
    ]

    out = pl.pallas_call(
        _mlp_kernel,
        out_shape=jax.ShapeDtypeStruct((b_pad, _OUT_PAD), jnp.float32),
        grid=grid,
        in_specs=[x_spec] + resident_specs,
        out_specs=out_spec,
        compiler_params=pltpu.CompilerParams(
            dimension_semantics=("parallel",)),
    )(x, *pads)

    return out[:B, :_N_OUT]


def init_params(key):
    """Deterministic init mimicking torch Linear's uniform(-1/sqrt(fan_in), +)."""
    params = {}
    for i, (fan_in, fan_out) in enumerate(_LOGICAL_DIMS, start=1):
        key, kw, kb = jax.random.split(key, 3)
        bound = 1.0 / jnp.sqrt(fan_in)
        # stored already transposed: (in, out)
        params[f"w{i}"] = jax.random.uniform(
            kw, (fan_in, fan_out), jnp.float32, -bound, bound)
        params[f"b{i}"] = jax.random.uniform(
            kb, (1, fan_out), jnp.float32, -bound, bound)
    return params


def reference_forward(x, params):
    x = x.reshape(x.shape[0], -1)
    h = jnp.maximum(x @ params["w1"] + params["b1"], 0.0)
    h = jnp.maximum(h @ params["w2"] + params["b2"], 0.0)
    h = jnp.maximum(h @ params["w3"] + params["b3"], 0.0)
    return h @ params["w4"] + params["b4"]


if __name__ == "__main__":
    key = jax.random.PRNGKey(0)
    key, kx = jax.random.split(key)

    # MNIST-like input: (batch, 1, 28, 28) NCHW; forward flattens to (batch, 784).
    batch = 8
    x_img = jax.random.normal(kx, (batch, 1, 28, 28), dtype=jnp.float32)

    params = init_params(key)

    out = mlp_forward(x_img, params)  # f32 path; pass compute_dtype=jnp.bfloat16 on v6e/v7x
    out = jax.block_until_ready(out)

    ref = reference_forward(x_img, params)
    assert out.shape == (batch, 10)
    assert jnp.allclose(out, ref, atol=1e-4, rtol=1e-4)

    print("KERNEL_OK")
</pallas_src>

<mosaic_0001>
module attributes {stable_mosaic.version = 11 : i64} {
  func.func @_mlp_kernel(%arg0: i32, %arg1: memref<8x784xf32, #tpu.memory_space<vmem>>, %arg2: memref<784x512xf32, #tpu.memory_space<vmem>>, %arg3: memref<1x512xf32, #tpu.memory_space<vmem>>, %arg4: memref<512x128xf32, #tpu.memory_space<vmem>>, %arg5: memref<1x128xf32, #tpu.memory_space<vmem>>, %arg6: memref<128x128xf32, #tpu.memory_space<vmem>>, %arg7: memref<1x128xf32, #tpu.memory_space<vmem>>, %arg8: memref<128x128xf32, #tpu.memory_space<vmem>>, %arg9: memref<1x128xf32, #tpu.memory_space<vmem>>, %arg10: memref<8x128xf32, #tpu.memory_space<vmem>>) attributes {dimension_semantics = [#tpu.dimension_semantics<parallel>], iteration_bounds = array<i64: 1>, scalar_prefetch = 0 : i64, scratch_operands = 0 : i64, tpu.core_type = #tpu.core_type<tc>, window_params = [{transform_indices = @transform_0, window_bounds = array<i64: 8, 784>}, {pipeline_mode = #tpu.pipeline_mode<synchronous>, transform_indices = @transform_1, window_bounds = array<i64: 784, 512>}, {pipeline_mode = #tpu.pipeline_mode<synchronous>, transform_indices = @transform_2, window_bounds = array<i64: 1, 512>}, {pipeline_mode = #tpu.pipeline_mode<synchronous>, transform_indices = @transform_3, window_bounds = array<i64: 512, 128>}, {pipeline_mode = #tpu.pipeline_mode<synchronous>, transform_indices = @transform_4, window_bounds = array<i64: 1, 128>}, {pipeline_mode = #tpu.pipeline_mode<synchronous>, transform_indices = @transform_5, window_bounds = array<i64: 128, 128>}, {pipeline_mode = #tpu.pipeline_mode<synchronous>, transform_indices = @transform_6, window_bounds = array<i64: 1, 128>}, {pipeline_mode = #tpu.pipeline_mode<synchronous>, transform_indices = @transform_7, window_bounds = array<i64: 128, 128>}, {pipeline_mode = #tpu.pipeline_mode<synchronous>, transform_indices = @transform_8, window_bounds = array<i64: 1, 128>}, {transform_indices = @transform_9, window_bounds = array<i64: 8, 128>}]} {
    %c0 = arith.constant 0 : index
    %c0_0 = arith.constant 0 : index
    %0 = vector.load %arg1[%c0, %c0_0] : memref<8x784xf32, #tpu.memory_space<vmem>>, vector<8x784xf32>
    %c0_1 = arith.constant 0 : index
    %c0_2 = arith.constant 0 : index
    %1 = vector.load %arg2[%c0_1, %c0_2] : memref<784x512xf32, #tpu.memory_space<vmem>>, vector<784x512xf32>
    %cst = arith.constant dense<0.000000e+00> : vector<8x512xf32>
    %2 = tpu.matmul %0, %1, %cst {dimension_numbers = #tpu.dot_dimension_numbers<[1], [0], [0], [1], [0, 0, 1, 1], [], []>} : vector<8x784xf32>, vector<784x512xf32>, vector<8x512xf32> -> vector<8x512xf32>
    %c0_3 = arith.constant 0 : index
    %c0_4 = arith.constant 0 : index
    %3 = vector.load %arg3[%c0_3, %c0_4] : memref<1x512xf32, #tpu.memory_space<vmem>>, vector<1x512xf32>
    %4 = vector.broadcast %3 : vector<1x512xf32> to vector<8x512xf32>
    %5 = arith.addf %2, %4 : vector<8x512xf32>
    %cst_5 = arith.constant 0.000000e+00 : f32
    %6 = vector.broadcast %cst_5 : f32 to vector<8x512xf32>
    %7 = arith.maximumf %5, %6 : vector<8x512xf32>
    %c0_6 = arith.constant 0 : index
    %c0_7 = arith.constant 0 : index
    %8 = vector.load %arg4[%c0_6, %c0_7] : memref<512x128xf32, #tpu.memory_space<vmem>>, vector<512x128xf32>
    %cst_8 = arith.constant dense<0.000000e+00> : vector<8x128xf32>
    %9 = tpu.matmul %7, %8, %cst_8 {dimension_numbers = #tpu.dot_dimension_numbers<[1], [0], [0], [1], [0, 0, 1, 1], [], []>} : vector<8x512xf32>, vector<512x128xf32>, vector<8x128xf32> -> vector<8x128xf32>
    %c0_9 = arith.constant 0 : index
    %c0_10 = arith.constant 0 : index
    %10 = vector.load %arg5[%c0_9, %c0_10] : memref<1x128xf32, #tpu.memory_space<vmem>>, vector<1x128xf32>
    %11 = vector.broadcast %10 : vector<1x128xf32> to vector<8x128xf32>
    %12 = arith.addf %9, %11 : vector<8x128xf32>
    %cst_11 = arith.constant 0.000000e+00 : f32
    %13 = vector.broadcast %cst_11 : f32 to vector<8x128xf32>
    %14 = arith.maximumf %12, %13 : vector<8x128xf32>
    %c0_12 = arith.constant 0 : index
    %c0_13 = arith.constant 0 : index
    %15 = vector.load %arg6[%c0_12, %c0_13] : memref<128x128xf32, #tpu.memory_space<vmem>>, vector<128x128xf32>
    %cst_14 = arith.constant dense<0.000000e+00> : vector<8x128xf32>
    %16 = tpu.matmul %14, %15, %cst_14 {dimension_numbers = #tpu.dot_dimension_numbers<[1], [0], [0], [1], [0, 0, 1, 1], [], []>} : vector<8x128xf32>, vector<128x128xf32>, vector<8x128xf32> -> vector<8x128xf32>
    %c0_15 = arith.constant 0 : index
    %c0_16 = arith.constant 0 : index
    %17 = vector.load %arg7[%c0_15, %c0_16] : memref<1x128xf32, #tpu.memory_space<vmem>>, vector<1x128xf32>
    %18 = vector.broadcast %17 : vector<1x128xf32> to vector<8x128xf32>
    %19 = arith.addf %16, %18 : vector<8x128xf32>
    %cst_17 = arith.constant 0.000000e+00 : f32
    %20 = vector.broadcast %cst_17 : f32 to vector<8x128xf32>
    %21 = arith.maximumf %19, %20 : vector<8x128xf32>
    %c0_18 = arith.constant 0 : index
    %c0_19 = arith.constant 0 : index
    %22 = vector.load %arg8[%c0_18, %c0_19] : memref<128x128xf32, #tpu.memory_space<vmem>>, vector<128x128xf32>
    %cst_20 = arith.constant dense<0.000000e+00> : vector<8x128xf32>
    %23 = tpu.matmul %21, %22, %cst_20 {dimension_numbers = #tpu.dot_dimension_numbers<[1], [0], [0], [1], [0, 0, 1, 1], [], []>} : vector<8x128xf32>, vector<128x128xf32>, vector<8x128xf32> -> vector<8x128xf32>
    %c0_21 = arith.constant 0 : index
    %c0_22 = arith.constant 0 : index
    %24 = vector.load %arg9[%c0_21, %c0_22] : memref<1x128xf32, #tpu.memory_space<vmem>>, vector<1x128xf32>
    %25 = vector.broadcast %24 : vector<1x128xf32> to vector<8x128xf32>
    %26 = arith.addf %23, %25 : vector<8x128xf32>
    %c0_23 = arith.constant 0 : index
    %c0_24 = arith.constant 0 : index
    %27 = vector.load %arg10[%c0_23, %c0_24] : memref<8x128xf32, #tpu.memory_space<vmem>>, vector<8x128xf32>
    tpu.vector_store %arg10[%c0_23, %c0_24], %26 {strides = array<i32>} : memref<8x128xf32, #tpu.memory_space<vmem>>, vector<8x128xf32>,
    return
  }
  func.func @transform_0(%arg0: i32) -> (i32, i32) {
    %c0_i32 = arith.constant 0 : i32
    %c0_i32_0 = arith.constant 0 : i32
    return %arg0, %c0_i32 : i32, i32
  }
  func.func @transform_1(%arg0: i32) -> (i32, i32) {
    %c0_i32 = arith.constant 0 : i32
    %c0_i32_0 = arith.constant 0 : i32
    %c0_i32_1 = arith.constant 0 : i32
    return %c0_i32, %c0_i32_0 : i32, i32
  }
  func.func @transform_2(%arg0: i32) -> (i32, i32) {
    %c0_i32 = arith.constant 0 : i32
    %c0_i32_0 = arith.constant 0 : i32
    %c0_i32_1 = arith.constant 0 : i32
    return %c0_i32, %c0_i32_0 : i32, i32
  }
  func.func @transform_3(%arg0: i32) -> (i32, i32) {
    %c0_i32 = arith.constant 0 : i32
    %c0_i32_0 = arith.constant 0 : i32
    %c0_i32_1 = arith.constant 0 : i32
    return %c0_i32, %c0_i32_0 : i32, i32
  }
  func.func @transform_4(%arg0: i32) -> (i32, i32) {
    %c0_i32 = arith.constant 0 : i32
    %c0_i32_0 = arith.constant 0 : i32
    %c0_i32_1 = arith.constant 0 : i32
    return %c0_i32, %c0_i32_0 : i32, i32
  }
  func.func @transform_5(%arg0: i32) -> (i32, i32) {
    %c0_i32 = arith.constant 0 : i32
    %c0_i32_0 = arith.constant 0 : i32
    %c0_i32_1 = arith.constant 0 : i32
    return %c0_i32, %c0_i32_0 : i32, i32
  }
  func.func @transform_6(%arg0: i32) -> (i32, i32) {
    %c0_i32 = arith.constant 0 : i32
    %c0_i32_0 = arith.constant 0 : i32
    %c0_i32_1 = arith.constant 0 : i32
    return %c0_i32, %c0_i32_0 : i32, i32
  }
  func.func @transform_7(%arg0: i32) -> (i32, i32) {
    %c0_i32 = arith.constant 0 : i32
    %c0_i32_0 = arith.constant 0 : i32
    %c0_i32_1 = arith.constant 0 : i32
    return %c0_i32, %c0_i32_0 : i32, i32
  }
  func.func @transform_8(%arg0: i32) -> (i32, i32) {
    %c0_i32 = arith.constant 0 : i32
    %c0_i32_0 = arith.constant 0 : i32
    %c0_i32_1 = arith.constant 0 : i32
    return %c0_i32, %c0_i32_0 : i32, i32
  }
  func.func @transform_9(%arg0: i32) -> (i32, i32) {
    %c0_i32 = arith.constant 0 : i32
    %c0_i32_0 = arith.constant 0 : i32
    return %arg0, %c0_i32 : i32, i32
  }
}

</mosaic_0001>

<llo_original>
// kernel: mlp_forward.1
$region0: #{mlp_forward.1}
  #allocation0 [shape = 'u32[]', space=smem, size = 0x4, offset = 0x4, fixed_abs, tag = 'smem constant byte address 0x4 - core index']
  #allocation1 [shape = 'u32[144,128]{1,0:T(1,128)}', space=vmem, size = 0x12000, scoped, tag = 'internal scratch']
  %s0 = inlined_call_operand.vmem [shape: f32[8,784], index: 0, kind: input, shape index: {}]
  %s1 = inlined_call_operand.vmem [shape: f32[784,512], index: 1, kind: input, shape index: {}]
  %s2 = inlined_call_operand.vmem [shape: f32[1,512], index: 2, kind: input, shape index: {}]
  %s3 = inlined_call_operand.vmem [shape: f32[512,128], index: 3, kind: input, shape index: {}]
  %s4 = inlined_call_operand.vmem [shape: f32[1,128], index: 4, kind: input, shape index: {}]
  %s5 = inlined_call_operand.vmem [shape: f32[128,128], index: 5, kind: input, shape index: {}]
  %s6 = inlined_call_operand.vmem [shape: f32[1,128], index: 6, kind: input, shape index: {}]
  %s7 = inlined_call_operand.vmem [shape: f32[128,128], index: 7, kind: input, shape index: {}]
  %s8 = inlined_call_operand.vmem [shape: f32[1,128], index: 8, kind: input, shape index: {}]
  %s9 = inlined_call_operand.hbm [shape: f32[8,128], index: 9, kind: output, shape index: {}]
  %s10 = sld [smem:[#allocation0]]
  $region46: #{mlp_forward.1} parent=0
    _
  %s12 = ssub.s32 1, %s10
  %s13 = scalar_select 0, %s12, %s10
  $region1: #{mlp_forward.1} parent=0
    #allocation2 [shape = 'u8[4096]{0}', space=vmem, size = 0x1000, scoped, tag = 'output window, operand 0, single buffered']
    #allocation3 [shape = 's32[1]{0}', space=sflag, size = 0x4, scoped, tag = 'scoped memory for mlp_forward.1']
    %14 = vsyncpa [#allocation3], 0
    // Predicated region
    $region2: #{mlp_forward.1} parent=1 // pred_check
      _
    $region3: #{mlp_forward.1} parent=1 // pred_check_branch
      %16 = sbr.rel (0) target = $region5
    $region4: #{mlp_forward.1} parent=1 // pred_region
      _
    $region5: #{mlp_forward.1} parent=1 // pred_fallthru
      _
    // Predicated region
    $region6: #{mlp_forward.1} parent=1 // pred_check
      _
    $region7: #{mlp_forward.1} parent=1 // pred_check_branch
      %18 = sbr.rel (0) target = $region9
    $region8: #{mlp_forward.1} parent=1 // pred_region
      _
    $region9: #{mlp_forward.1} parent=1 // pred_fallthru
      _
    // Predicated region
    $region10: #{mlp_forward.1} parent=1 // pred_check
      _
    $region11: #{mlp_forward.1} parent=1 // pred_check_branch
      %20 = sbr.rel (0) target = $region13
    $region12: #{mlp_forward.1} parent=1 // pred_region
      _
    $region13: #{mlp_forward.1} parent=1 // pred_fallthru
      _
    // Predicated region
    $region14: #{mlp_forward.1} parent=1 // pred_check
      _
    $region15: #{mlp_forward.1} parent=1 // pred_check_branch
      %22 = sbr.rel (0) target = $region17
    $region16: #{mlp_forward.1} parent=1 // pred_region
      _
    $region17: #{mlp_forward.1} parent=1 // pred_fallthru
      _
    // Predicated region
    $region18: #{mlp_forward.1} parent=1 // pred_check
      _
    $region19: #{mlp_forward.1} parent=1 // pred_check_branch
      %24 = sbr.rel (0) target = $region21
    $region20: #{mlp_forward.1} parent=1 // pred_region
      _
    $region21: #{mlp_forward.1} parent=1 // pred_fallthru
      _
    // Predicated region
    $region22: #{mlp_forward.1} parent=1 // pred_check
      _
    $region23: #{mlp_forward.1} parent=1 // pred_check_branch
      %26 = sbr.rel (0) target = $region25
    $region24: #{mlp_forward.1} parent=1 // pred_region
      _
    $region25: #{mlp_forward.1} parent=1 // pred_fallthru
      _
    // Predicated region
    $region26: #{mlp_forward.1} parent=1 // pred_check
      _
    $region27: #{mlp_forward.1} parent=1 // pred_check_branch
      %28 = sbr.rel (0) target = $region29
    $region28: #{mlp_forward.1} parent=1 // pred_region
      _
    $region29: #{mlp_forward.1} parent=1 // pred_fallthru
      _
    // Predicated region
    $region30: #{mlp_forward.1} parent=1 // pred_check
      _
    $region31: #{mlp_forward.1} parent=1 // pred_check_branch
      %30 = sbr.rel (0) target = $region33
    $region32: #{mlp_forward.1} parent=1 // pred_region
      _
    $region33: #{mlp_forward.1} parent=1 // pred_fallthru
      _
    // Predicated region
    $region34: #{mlp_forward.1} parent=1 // pred_check
      _
    $region35: #{mlp_forward.1} parent=1 // pred_check_branch
      %32 = sbr.rel (0) target = $region37
    $region36: #{mlp_forward.1} parent=1 // pred_region
      _
    $region37: #{mlp_forward.1} parent=1 // pred_fallthru
      _
    %v33 = vld [vmem:[%s0] sm:$0xff]
    %v34 = vld [vmem:[%s0 + $0x8] sm:$0xff]
    %v35 = vld [vmem:[%s0 + $0x10] sm:$0xff]
    %v36 = vld [vmem:[%s0 + $0x18] sm:$0xff]
    %v37 = vld [vmem:[%s0 + $0x20] sm:$0xff]
    %v38 = vld [vmem:[%s0 + $0x28] sm:$0xff]
    %v39 = vld [vmem:[%s0 + $0x30] sm:$0xff]
    %v40 = vld [vmem:[%s1] sm:$0xff]
    %v41 = vld [vmem:[%s1 + $0x8] sm:$0xff]
    %v42 = vld [vmem:[%s1 + $0x10] sm:$0xff]
    %v43 = vld [vmem:[%s1 + $0x18] sm:$0xff]
    %v44 = vld [vmem:[%s1 + $0x20] sm:$0xff]
    %v45 = vld [vmem:[%s1 + $0x28] sm:$0xff]
    %v46 = vld [vmem:[%s1 + $0x30] sm:$0xff]
    %v47 = vld [vmem:[%s1 + $0x38] sm:$0xff]
    %v48 = vld [vmem:[%s1 + $0x40] sm:$0xff]
    %v49 = vld [vmem:[%s1 + $0x48] sm:$0xff]
    %v50 = vld [vmem:[%s1 + $0x50] sm:$0xff]
    %v51 = vld [vmem:[%s1 + $0x58] sm:$0xff]
    %v52 = vld [vmem:[%s1 + $0x60] sm:$0xff]
    %v53 = vld [vmem:[%s1 + $0x68] sm:$0xff]
    %v54 = vld [vmem:[%s1 + $0x70] sm:$0xff]
    %v55 = vld [vmem:[%s1 + $0x78] sm:$0xff]
    %v56 = vld [vmem:[%s1 + $0x80] sm:$0xff]
    %v57 = vld [vmem:[%s1 + $0x88] sm:$0xff]
    %v58 = vld [vmem:[%s1 + $0x90] sm:$0xff]
    %v59 = vld [vmem:[%s1 + $0x98] sm:$0xff]
    %v60 = vld [vmem:[%s1 + $0xa0] sm:$0xff]
    %v61 = vld [vmem:[%s1 + $0xa8] sm:$0xff]
    %v62 = vld [vmem:[%s1 + $0xb0] sm:$0xff]
    %v63 = vld [vmem:[%s1 + $0xb8] sm:$0xff]
    %v64 = vld [vmem:[%s1 + $0xc0] sm:$0xff]
    %v65 = vld [vmem:[%s1 + $0xc8] sm:$0xff]
    %v66 = vld [vmem:[%s1 + $0xd0] sm:$0xff]
    %v67 = vld [vmem:[%s1 + $0xd8] sm:$0xff]
    %v68 = vld [vmem:[%s1 + $0xe0] sm:$0xff]
    %v69 = vld [vmem:[%s1 + $0xe8] sm:$0xff]
    %v70 = vld [vmem:[%s1 + $0xf0] sm:$0xff]
    %v71 = vld [vmem:[%s1 + $0xf8] sm:$0xff]
    %v72 = vld [vmem:[%s1 + $0x100] sm:$0xff]
    %v73 = vld [vmem:[%s1 + $0x108] sm:$0xff]
    %v74 = vld [vmem:[%s1 + $0x110] sm:$0xff]
    %v75 = vld [vmem:[%s1 + $0x118] sm:$0xff]
    %v76 = vld [vmem:[%s1 + $0x120] sm:$0xff]
    %v77 = vld [vmem:[%s1 + $0x128] sm:$0xff]
    %v78 = vld [vmem:[%s1 + $0x130] sm:$0xff]
    %v79 = vld [vmem:[%s1 + $0x138] sm:$0xff]
    %v80 = vld [vmem:[%s1 + $0x140] sm:$0xff]
    %v81 = vld [vmem:[%s1 + $0x148] sm:$0xff]
    %v82 = vld [vmem:[%s1 + $0x150] sm:$0xff]
    %v83 = vld [vmem:[%s1 + $0x158] sm:$0xff]
    %v84 = vld [vmem:[%s1 + $0x160] sm:$0xff]
    %v85 = vld [vmem:[%s1 + $0x168] sm:$0xff]
    %v86 = vld [vmem:[%s1 + $0x170] sm:$0xff]
    %v87 = vld [vmem:[%s1 + $0x178] sm:$0xff]
    %v88 = vld [vmem:[%s1 + $0x180] sm:$0xff]
    %v89 = vld [vmem:[%s1 + $0x188] sm:$0xff]
    %v90 = vld [vmem:[%s1 + $0x190] sm:$0xff]
    %v91 = vld [vmem:[%s1 + $0x198] sm:$0xff]
    %v92 = vld [vmem:[%s1 + $0x1a0] sm:$0xff]
    %v93 = vld [vmem:[%s1 + $0x1a8] sm:$0xff]
    %v94 = vld [vmem:[%s1 + $0x1b0] sm:$0xff]
    %v95 = vld [vmem:[%s1 + $0x1b8] sm:$0xff]
    %v96 = vld [vmem:[%s1 + $0x1c0] sm:$0xff]
    %v97 = vld [vmem:[%s1 + $0x1c8] sm:$0xff]
    %v98 = vld [vmem:[%s1 + $0x1d0] sm:$0xff]
    %v99 = vld [vmem:[%s1 + $0x1d8] sm:$0xff]
    %v100 = vld [vmem:[%s1 + $0x1e0] sm:$0xff]
    %v101 = vld [vmem:[%s1 + $0x1e8] sm:$0xff]
    %v102 = vld [vmem:[%s1 + $0x1f0] sm:$0xff]
    %v103 = vld [vmem:[%s1 + $0x1f8] sm:$0xff]
    %v104 = vld [vmem:[%s1 + $0x200] sm:$0xff]
    %v105 = vld [vmem:[%s1 + $0x208] sm:$0xff]
    %v106 = vld [vmem:[%s1 + $0x210] sm:$0xff]
    %v107 = vld [vmem:[%s1 + $0x218] sm:$0xff]
    %v108 = vld [vmem:[%s1 + $0x220] sm:$0xff]
    %v109 = vld [vmem:[%s1 + $0x228] sm:$0xff]
    %v110 = vld [vmem:[%s1 + $0x230] sm:$0xff]
    %v111 = vld [vmem:[%s1 + $0x238] sm:$0xff]
    %v112 = vld [vmem:[%s1 + $0x240] sm:$0xff]
    %v113 = vld [vmem:[%s1 + $0x248] sm:$0xff]
    %v114 = vld [vmem:[%s1 + $0x250] sm:$0xff]
    %v115 = vld [vmem:[%s1 + $0x258] sm:$0xff]
    %v116 = vld [vmem:[%s1 + $0x260] sm:$0xff]
    %v117 = vld [vmem:[%s1 + $0x268] sm:$0xff]
    %v118 = vld [vmem:[%s1 + $0x270] sm:$0xff]
    %v119 = vld [vmem:[%s1 + $0x278] sm:$0xff]
    %v120 = vld [vmem:[%s1 + $0x280] sm:$0xff]
    %v121 = vld [vmem:[%s1 + $0x288] sm:$0xff]
    %v122 = vld [vmem:[%s1 + $0x290] sm:$0xff]
    %v123 = vld [vmem:[%s1 + $0x298] sm:$0xff]
    %v124 = vld [vmem:[%s1 + $0x2a0] sm:$0xff]
    %v125 = vld [vmem:[%s1 + $0x2a8] sm:$0xff]
    %v126 = vld [vmem:[%s1 + $0x2b0] sm:$0xff]
    %v127 = vld [vmem:[%s1 + $0x2b8] sm:$0xff]
    %v128 = vld [vmem:[%s1 + $0x2c0] sm:$0xff]
    %v129 = vld [vmem:[%s1 + $0x2c8] sm:$0xff]
    %v130 = vld [vmem:[%s1 + $0x2d0] sm:$0xff]
    %v131 = vld [vmem:[%s1 + $0x2d8] sm:$0xff]
    %v132 = vld [vmem:[%s1 + $0x2e0] sm:$0xff]
    %v133 = vld [vmem:[%s1 + $0x2e8] sm:$0xff]
    %v134 = vld [vmem:[%s1 + $0x2f0] sm:$0xff]
    %v135 = vld [vmem:[%s1 + $0x2f8] sm:$0xff]
    %v136 = vld [vmem:[%s1 + $0x300] sm:$0xff]
    %v137 = vld [vmem:[%s1 + $0x308] sm:$0xff]
    %v138 = vld [vmem:[%s1 + $0x310] sm:$0xff]
    %v139 = vld [vmem:[%s1 + $0x318] sm:$0xff]
    %v140 = vld [vmem:[%s1 + $0x320] sm:$0xff]
    %v141 = vld [vmem:[%s1 + $0x328] sm:$0xff]
    %v142 = vld [vmem:[%s1 + $0x330] sm:$0xff]
    %v143 = vld [vmem:[%s1 + $0x338] sm:$0xff]
    %v144 = vld [vmem:[%s1 + $0x340] sm:$0xff]
    %v145 = vld [vmem:[%s1 + $0x348] sm:$0xff]
    %v146 = vld [vmem:[%s1 + $0x350] sm:$0xff]
    %v147 = vld [vmem:[%s1 + $0x358] sm:$0xff]
    %v148 = vld [vmem:[%s1 + $0x360] sm:$0xff]
    %v149 = vld [vmem:[%s1 + $0x368] sm:$0xff]
    %v150 = vld [vmem:[%s1 + $0x370] sm:$0xff]
    %v151 = vld [vmem:[%s1 + $0x378] sm:$0xff]
    %v152 = vld [vmem:[%s1 + $0x380] sm:$0xff]
    %v153 = vld [vmem:[%s1 + $0x388] sm:$0xff]
    %v154 = vld [vmem:[%s1 + $0x390] sm:$0xff]
    %v155 = vld [vmem:[%s1 + $0x398] sm:$0xff]
    %v156 = vld [vmem:[%s1 + $0x3a0] sm:$0xff]
    %v157 = vld [vmem:[%s1 + $0x3a8] sm:$0xff]
    %v158 = vld [vmem:[%s1 + $0x3b0] sm:$0xff]
    %v159 = vld [vmem:[%s1 + $0x3b8] sm:$0xff]
    %v160 = vld [vmem:[%s1 + $0x3c0] sm:$0xff]
    %v161 = vld [vmem:[%s1 + $0x3c8] sm:$0xff]
    %v162 = vld [vmem:[%s1 + $0x3d0] sm:$0xff]
    %v163 = vld [vmem:[%s1 + $0x3d8] sm:$0xff]
    %v164 = vld [vmem:[%s1 + $0x3e0] sm:$0xff]
    %v165 = vld [vmem:[%s1 + $0x3e8] sm:$0xff]
    %v166 = vld [vmem:[%s1 + $0x3f0] sm:$0xff]
    %v167 = vld [vmem:[%s1 + $0x3f8] sm:$0xff]
    %v168 = vld [vmem:[%s1 + $0x400] sm:$0xff]
    %v169 = vld [vmem:[%s1 + $0x408] sm:$0xff]
    %v170 = vld [vmem:[%s1 + $0x410] sm:$0xff]
    %v171 = vld [vmem:[%s1 + $0x418] sm:$0xff]
    %v172 = vld [vmem:[%s1 + $0x420] sm:$0xff]
    %v173 = vld [vmem:[%s1 + $0x428] sm:$0xff]
    %v174 = vld [vmem:[%s1 + $0x430] sm:$0xff]
    %v175 = vld [vmem:[%s1 + $0x438] sm:$0xff]
    %v176 = vld [vmem:[%s1 + $0x440] sm:$0xff]
    %v177 = vld [vmem:[%s1 + $0x448] sm:$0xff]
    %v178 = vld [vmem:[%s1 + $0x450] sm:$0xff]
    %v179 = vld [vmem:[%s1 + $0x458] sm:$0xff]
    %v180 = vld [vmem:[%s1 + $0x460] sm:$0xff]
    %v181 = vld [vmem:[%s1 + $0x468] sm:$0xff]
    %v182 = vld [vmem:[%s1 + $0x470] sm:$0xff]
    %v183 = vld [vmem:[%s1 + $0x478] sm:$0xff]
    %v184 = vld [vmem:[%s1 + $0x480] sm:$0xff]
    %v185 = vld [vmem:[%s1 + $0x488] sm:$0xff]
    %v186 = vld [vmem:[%s1 + $0x490] sm:$0xff]
    %v187 = vld [vmem:[%s1 + $0x498] sm:$0xff]
    %v188 = vld [vmem:[%s1 + $0x4a0] sm:$0xff]
    %v189 = vld [vmem:[%s1 + $0x4a8] sm:$0xff]
    %v190 = vld [vmem:[%s1 + $0x4b0] sm:$0xff]
    %v191 = vld [vmem:[%s1 + $0x4b8] sm:$0xff]
    %v192 = vld [vmem:[%s1 + $0x4c0] sm:$0xff]
    %v193 = vld [vmem:[%s1 + $0x4c8] sm:$0xff]
    %v194 = vld [vmem:[%s1 + $0x4d0] sm:$0xff]
    %v195 = vld [vmem:[%s1 + $0x4d8] sm:$0xff]
    %v196 = vld [vmem:[%s1 + $0x4e0] sm:$0xff]
    %v197 = vld [vmem:[%s1 + $0x4e8] sm:$0xff]
    %v198 = vld [vmem:[%s1 + $0x4f0] sm:$0xff]
    %v199 = vld [vmem:[%s1 + $0x4f8] sm:$0xff]
    %v200 = vld [vmem:[%s1 + $0x500] sm:$0xff]
    %v201 = vld [vmem:[%s1 + $0x508] sm:$0xff]
    %v202 = vld [vmem:[%s1 + $0x510] sm:$0xff]
    %v203 = vld [vmem:[%s1 + $0x518] sm:$0xff]
    %v204 = vld [vmem:[%s1 + $0x520] sm:$0xff]
    %v205 = vld [vmem:[%s1 + $0x528] sm:$0xff]
    %v206 = vld [vmem:[%s1 + $0x530] sm:$0xff]
    %v207 = vld [vmem:[%s1 + $0x538] sm:$0xff]
    %v208 = vld [vmem:[%s1 + $0x540] sm:$0xff]
    %v209 = vld [vmem:[%s1 + $0x548] sm:$0xff]
    %v210 = vld [vmem:[%s1 + $0x550] sm:$0xff]
    %v211 = vld [vmem:[%s1 + $0x558] sm:$0xff]
    %v212 = vld [vmem:[%s1 + $0x560] sm:$0xff]
    %v213 = vld [vmem:[%s1 + $0x568] sm:$0xff]
    %v214 = vld [vmem:[%s1 + $0x570] sm:$0xff]
    %v215 = vld [vmem:[%s1 + $0x578] sm:$0xff]
    %v216 = vld [vmem:[%s1 + $0x580] sm:$0xff]
    %v217 = vld [vmem:[%s1 + $0x588] sm:$0xff]
    %v218 = vld [vmem:[%s1 + $0x590] sm:$0xff]
    %v219 = vld [vmem:[%s1 + $0x598] sm:$0xff]
    %v220 = vld [vmem:[%s1 + $0x5a0] sm:$0xff]
    %v221 = vld [vmem:[%s1 + $0x5a8] sm:$0xff]
    %v222 = vld [vmem:[%s1 + $0x5b0] sm:$0xff]
    %v223 = vld [vmem:[%s1 + $0x5b8] sm:$0xff]
    %v224 = vld [vmem:[%s1 + $0x5c0] sm:$0xff]
    %v225 = vld [vmem:[%s1 + $0x5c8] sm:$0xff]
    %v226 = vld [vmem:[%s1 + $0x5d0] sm:$0xff]
    %v227 = vld [vmem:[%s1 + $0x5d8] sm:$0xff]
    %v228 = vld [vmem:[%s1 + $0x5e0] sm:$0xff]
    %v229 = vld [vmem:[%s1 + $0x5e8] sm:$0xff]
    %v230 = vld [vmem:[%s1 + $0x5f0] sm:$0xff]
    %v231 = vld [vmem:[%s1 + $0x5f8] sm:$0xff]
    %v232 = vld [vmem:[%s1 + $0x600] sm:$0xff]
    %v233 = vld [vmem:[%s1 + $0x608] sm:$0xff]
    %v234 = vld [vmem:[%s1 + $0x610] sm:$0xff]
    %v235 = vld [vmem:[%s1 + $0x618] sm:$0xff]
    %v236 = vld [vmem:[%s1 + $0x620] sm:$0xff]
    %v237 = vld [vmem:[%s1 + $0x628] sm:$0xff]
    %v238 = vld [vmem:[%s1 + $0x630] sm:$0xff]
    %v239 = vld [vmem:[%s1 + $0x638] sm:$0xff]
    %v240 = vld [vmem:[%s1 + $0x640] sm:$0xff]
    %v241 = vld [vmem:[%s1 + $0x648] sm:$0xff]
    %v242 = vld [vmem:[%s1 + $0x650] sm:$0xff]
    %v243 = vld [vmem:[%s1 + $0x658] sm:$0xff]
    %v244 = vld [vmem:[%s1 + $0x660] sm:$0xff]
    %v245 = vld [vmem:[%s1 + $0x668] sm:$0xff]
    %v246 = vld [vmem:[%s1 + $0x670] sm:$0xff]
    %v247 = vld [vmem:[%s1 + $0x678] sm:$0xff]
    %v248 = vld [vmem:[%s1 + $0x680] sm:$0xff]
    %v249 = vld [vmem:[%s1 + $0x688] sm:$0xff]
    %v250 = vld [vmem:[%s1 + $0x690] sm:$0xff]
    %v251 = vld [vmem:[%s1 + $0x698] sm:$0xff]
    %v252 = vld [vmem:[%s1 + $0x6a0] sm:$0xff]
    %v253 = vld [vmem:[%s1 + $0x6a8] sm:$0xff]
    %v254 = vld [vmem:[%s1 + $0x6b0] sm:$0xff]
    %v255 = vld [vmem:[%s1 + $0x6b8] sm:$0xff]
    %v256 = vld [vmem:[%s1 + $0x6c0] sm:$0xff]
    %v257 = vld [vmem:[%s1 + $0x6c8] sm:$0xff]
    %v258 = vld [vmem:[%s1 + $0x6d0] sm:$0xff]
    %v259 = vld [vmem:[%s1 + $0x6d8] sm:$0xff]
    %v260 = vld [vmem:[%s1 + $0x6e0] sm:$0xff]
    %v261 = vld [vmem:[%s1 + $0x6e8] sm:$0xff]
    %v262 = vld [vmem:[%s1 + $0x6f0] sm:$0xff]
    %v263 = vld [vmem:[%s1 + $0x6f8] sm:$0xff]
    %v264 = vld [vmem:[%s1 + $0x700] sm:$0xff]
    %v265 = vld [vmem:[%s1 + $0x708] sm:$0xff]
    %v266 = vld [vmem:[%s1 + $0x710] sm:$0xff]
    %v267 = vld [vmem:[%s1 + $0x718] sm:$0xff]
    %v268 = vld [vmem:[%s1 + $0x720] sm:$0xff]
    %v269 = vld [vmem:[%s1 + $0x728] sm:$0xff]
    %v270 = vld [vmem:[%s1 + $0x730] sm:$0xff]
    %v271 = vld [vmem:[%s1 + $0x738] sm:$0xff]
    %v272 = vld [vmem:[%s1 + $0x740] sm:$0xff]
    %v273 = vld [vmem:[%s1 + $0x748] sm:$0xff]
    %v274 = vld [vmem:[%s1 + $0x750] sm:$0xff]
    %v275 = vld [vmem:[%s1 + $0x758] sm:$0xff]
    %v276 = vld [vmem:[%s1 + $0x760] sm:$0xff]
    %v277 = vld [vmem:[%s1 + $0x768] sm:$0xff]
    %v278 = vld [vmem:[%s1 + $0x770] sm:$0xff]
    %v279 = vld [vmem:[%s1 + $0x778] sm:$0xff]
    %v280 = vld [vmem:[%s1 + $0x780] sm:$0xff]
    %v281 = vld [vmem:[%s1 + $0x788] sm:$0xff]
    %v282 = vld [vmem:[%s1 + $0x790] sm:$0xff]
    %v283 = vld [vmem:[%s1 + $0x798] sm:$0xff]
    %v284 = vld [vmem:[%s1 + $0x7a0] sm:$0xff]
    %v285 = vld [vmem:[%s1 + $0x7a8] sm:$0xff]
    %v286 = vld [vmem:[%s1 + $0x7b0] sm:$0xff]
    %v287 = vld [vmem:[%s1 + $0x7b8] sm:$0xff]
    %v288 = vld [vmem:[%s1 + $0x7c0] sm:$0xff]
    %v289 = vld [vmem:[%s1 + $0x7c8] sm:$0xff]
    %v290 = vld [vmem:[%s1 + $0x7d0] sm:$0xff]
    %v291 = vld [vmem:[%s1 + $0x7d8] sm:$0xff]
    %v292 = vld [vmem:[%s1 + $0x7e0] sm:$0xff]
    %v293 = vld [vmem:[%s1 + $0x7e8] sm:$0xff]
    %v294 = vld [vmem:[%s1 + $0x7f0] sm:$0xff]
    %v295 = vld [vmem:[%s1 + $0x7f8] sm:$0xff]
    %v296 = vld [vmem:[%s1 + $0x800] sm:$0xff]
    %v297 = vld [vmem:[%s1 + $0x808] sm:$0xff]
    %v298 = vld [vmem:[%s1 + $0x810] sm:$0xff]
    %v299 = vld [vmem:[%s1 + $0x818] sm:$0xff]
    %v300 = vld [vmem:[%s1 + $0x820] sm:$0xff]
    %v301 = vld [vmem:[%s1 + $0x828] sm:$0xff]
    %v302 = vld [vmem:[%s1 + $0x830] sm:$0xff]
    %v303 = vld [vmem:[%s1 + $0x838] sm:$0xff]
    %v304 = vld [vmem:[%s1 + $0x840] sm:$0xff]
    %v305 = vld [vmem:[%s1 + $0x848] sm:$0xff]
    %v306 = vld [vmem:[%s1 + $0x850] sm:$0xff]
    %v307 = vld [vmem:[%s1 + $0x858] sm:$0xff]
    %v308 = vld [vmem:[%s1 + $0x860] sm:$0xff]
    %v309 = vld [vmem:[%s1 + $0x868] sm:$0xff]
    %v310 = vld [vmem:[%s1 + $0x870] sm:$0xff]
    %v311 = vld [vmem:[%s1 + $0x878] sm:$0xff]
    %v312 = vld [vmem:[%s1 + $0x880] sm:$0xff]
    %v313 = vld [vmem:[%s1 + $0x888] sm:$0xff]
    %v314 = vld [vmem:[%s1 + $0x890] sm:$0xff]
    %v315 = vld [vmem:[%s1 + $0x898] sm:$0xff]
    %v316 = vld [vmem:[%s1 + $0x8a0] sm:$0xff]
    %v317 = vld [vmem:[%s1 + $0x8a8] sm:$0xff]
    %v318 = vld [vmem:[%s1 + $0x8b0] sm:$0xff]
    %v319 = vld [vmem:[%s1 + $0x8b8] sm:$0xff]
    %v320 = vld [vmem:[%s1 + $0x8c0] sm:$0xff]
    %v321 = vld [vmem:[%s1 + $0x8c8] sm:$0xff]
    %v322 = vld [vmem:[%s1 + $0x8d0] sm:$0xff]
    %v323 = vld [vmem:[%s1 + $0x8d8] sm:$0xff]
    %v324 = vld [vmem:[%s1 + $0x8e0] sm:$0xff]
    %v325 = vld [vmem:[%s1 + $0x8e8] sm:$0xff]
    %v326 = vld [vmem:[%s1 + $0x8f0] sm:$0xff]
    %v327 = vld [vmem:[%s1 + $0x8f8] sm:$0xff]
    %v328 = vld [vmem:[%s1 + $0x900] sm:$0xff]
    %v329 = vld [vmem:[%s1 + $0x908] sm:$0xff]
    %v330 = vld [vmem:[%s1 + $0x910] sm:$0xff]
    %v331 = vld [vmem:[%s1 + $0x918] sm:$0xff]
    %v332 = vld [vmem:[%s1 + $0x920] sm:$0xff]
    %v333 = vld [vmem:[%s1 + $0x928] sm:$0xff]
    %v334 = vld [vmem:[%s1 + $0x930] sm:$0xff]
    %v335 = vld [vmem:[%s1 + $0x938] sm:$0xff]
    %v336 = vld [vmem:[%s1 + $0x940] sm:$0xff]
    %v337 = vld [vmem:[%s1 + $0x948] sm:$0xff]
    %v338 = vld [vmem:[%s1 + $0x950] sm:$0xff]
    %v339 = vld [vmem:[%s1 + $0x958] sm:$0xff]
    %v340 = vld [vmem:[%s1 + $0x960] sm:$0xff]
    %v341 = vld [vmem:[%s1 + $0x968] sm:$0xff]
    %v342 = vld [vmem:[%s1 + $0x970] sm:$0xff]
    %v343 = vld [vmem:[%s1 + $0x978] sm:$0xff]
    %v344 = vld [vmem:[%s1 + $0x980] sm:$0xff]
    %v345 = vld [vmem:[%s1 + $0x988] sm:$0xff]
    %v346 = vld [vmem:[%s1 + $0x990] sm:$0xff]
    %v347 = vld [vmem:[%s1 + $0x998] sm:$0xff]
    %v348 = vld [vmem:[%s1 + $0x9a0] sm:$0xff]
    %v349 = vld [vmem:[%s1 + $0x9a8] sm:$0xff]
    %v350 = vld [vmem:[%s1 + $0x9b0] sm:$0xff]
    %v351 = vld [vmem:[%s1 + $0x9b8] sm:$0xff]
    %v352 = vld [vmem:[%s1 + $0x9c0] sm:$0xff]
    %v353 = vld [vmem:[%s1 + $0x9c8] sm:$0xff]
    %v354 = vld [vmem:[%s1 + $0x9d0] sm:$0xff]
    %v355 = vld [vmem:[%s1 + $0x9d8] sm:$0xff]
    %v356 = vld [vmem:[%s1 + $0x9e0] sm:$0xff]
    %v357 = vld [vmem:[%s1 + $0x9e8] sm:$0xff]
    %v358 = vld [vmem:[%s1 + $0x9f0] sm:$0xff]
    %v359 = vld [vmem:[%s1 + $0x9f8] sm:$0xff]
    %v360 = vld [vmem:[%s1 + $0xa00] sm:$0xff]
    %v361 = vld [vmem:[%s1 + $0xa08] sm:$0xff]
    %v362 = vld [vmem:[%s1 + $0xa10] sm:$0xff]
    %v363 = vld [vmem:[%s1 + $0xa18] sm:$0xff]
    %v364 = vld [vmem:[%s1 + $0xa20] sm:$0xff]
    %v365 = vld [vmem:[%s1 + $0xa28] sm:$0xff]
    %v366 = vld [vmem:[%s1 + $0xa30] sm:$0xff]
    %v367 = vld [vmem:[%s1 + $0xa38] sm:$0xff]
    %v368 = vld [vmem:[%s1 + $0xa40] sm:$0xff]
    %v369 = vld [vmem:[%s1 + $0xa48] sm:$0xff]
    %v370 = vld [vmem:[%s1 + $0xa50] sm:$0xff]
    %v371 = vld [vmem:[%s1 + $0xa58] sm:$0xff]
    %v372 = vld [vmem:[%s1 + $0xa60] sm:$0xff]
    %v373 = vld [vmem:[%s1 + $0xa68] sm:$0xff]
    %v374 = vld [vmem:[%s1 + $0xa70] sm:$0xff]
    %v375 = vld [vmem:[%s1 + $0xa78] sm:$0xff]
    %v376 = vld [vmem:[%s1 + $0xa80] sm:$0xff]
    %v377 = vld [vmem:[%s1 + $0xa88] sm:$0xff]
    %v378 = vld [vmem:[%s1 + $0xa90] sm:$0xff]
    %v379 = vld [vmem:[%s1 + $0xa98] sm:$0xff]
    %v380 = vld [vmem:[%s1 + $0xaa0] sm:$0xff]
    %v381 = vld [vmem:[%s1 + $0xaa8] sm:$0xff]
    %v382 = vld [vmem:[%s1 + $0xab0] sm:$0xff]
    %v383 = vld [vmem:[%s1 + $0xab8] sm:$0xff]
    %v384 = vld [vmem:[%s1 + $0xac0] sm:$0xff]
    %v385 = vld [vmem:[%s1 + $0xac8] sm:$0xff]
    %v386 = vld [vmem:[%s1 + $0xad0] sm:$0xff]
    %v387 = vld [vmem:[%s1 + $0xad8] sm:$0xff]
    %v388 = vld [vmem:[%s1 + $0xae0] sm:$0xff]
    %v389 = vld [vmem:[%s1 + $0xae8] sm:$0xff]
    %v390 = vld [vmem:[%s1 + $0xaf0] sm:$0xff]
    %v391 = vld [vmem:[%s1 + $0xaf8] sm:$0xff]
    %v392 = vld [vmem:[%s1 + $0xb00] sm:$0xff]
    %v393 = vld [vmem:[%s1 + $0xb08] sm:$0xff]
    %v394 = vld [vmem:[%s1 + $0xb10] sm:$0xff]
    %v395 = vld [vmem:[%s1 + $0xb18] sm:$0xff]
    %v396 = vld [vmem:[%s1 + $0xb20] sm:$0xff]
    %v397 = vld [vmem:[%s1 + $0xb28] sm:$0xff]
    %v398 = vld [vmem:[%s1 + $0xb30] sm:$0xff]
    %v399 = vld [vmem:[%s1 + $0xb38] sm:$0xff]
    %v400 = vld [vmem:[%s1 + $0xb40] sm:$0xff]
    %v401 = vld [vmem:[%s1 + $0xb48] sm:$0xff]
    %v402 = vld [vmem:[%s1 + $0xb50] sm:$0xff]
    %v403 = vld [vmem:[%s1 + $0xb58] sm:$0xff]
    %v404 = vld [vmem:[%s1 + $0xb60] sm:$0xff]
    %v405 = vld [vmem:[%s1 + $0xb68] sm:$0xff]
    %v406 = vld [vmem:[%s1 + $0xb70] sm:$0xff]
    %v407 = vld [vmem:[%s1 + $0xb78] sm:$0xff]
    %v408 = vld [vmem:[%s1 + $0xb80] sm:$0xff]
    %v409 = vld [vmem:[%s1 + $0xb88] sm:$0xff]
    %v410 = vld [vmem:[%s1 + $0xb90] sm:$0xff]
    %v411 = vld [vmem:[%s1 + $0xb98] sm:$0xff]
    %v412 = vld [vmem:[%s1 + $0xba0] sm:$0xff]
    %v413 = vld [vmem:[%s1 + $0xba8] sm:$0xff]
    %v414 = vld [vmem:[%s1 + $0xbb0] sm:$0xff]
    %v415 = vld [vmem:[%s1 + $0xbb8] sm:$0xff]
    %v416 = vld [vmem:[%s1 + $0xbc0] sm:$0xff]
    %v417 = vld [vmem:[%s1 + $0xbc8] sm:$0xff]
    %v418 = vld [vmem:[%s1 + $0xbd0] sm:$0xff]
    %v419 = vld [vmem:[%s1 + $0xbd8] sm:$0xff]
    %v420 = vld [vmem:[%s1 + $0xbe0] sm:$0xff]
    %v421 = vld [vmem:[%s1 + $0xbe8] sm:$0xff]
    %v422 = vld [vmem:[%s1 + $0xbf0] sm:$0xff]
    %v423 = vld [vmem:[%s1 + $0xbf8] sm:$0xff]
    %v424 = vld [vmem:[%s1 + $0xc00] sm:$0xff]
    %v425 = vld [vmem:[%s1 + $0xc08] sm:$0xff]
    %v426 = vld [vmem:[%s1 + $0xc10] sm:$0xff]
    %v427 = vld [vmem:[%s1 + $0xc18] sm:$0xff]
    %v428 = vld [vmem:[%s1 + $0xc20] sm:$0xff]
    %v429 = vld [vmem:[%s1 + $0xc28] sm:$0xff]
    %v430 = vld [vmem:[%s1 + $0xc30] sm:$0xff]
    %v431 = vld [vmem:[%s1 + $0xc38] sm:$0xff]
    %v432 = vld [vmem:[%s2] sm:$0xf]
    %v434 = vlaneseq
    %v435 = vshrl.u32 %v434, 7
    %v436 = vsub.s32 0, %v435
    %v437 = vrot.slane %v432, %v436
    %v438 = vlaneseq
    %v439 = vshrl.u32 %v438, 7
    %v440 = vsub.s32 1, %v439
    %v441 = vrot.slane %v432, %v440
    %v442 = vlaneseq
    %v443 = vshrl.u32 %v442, 7
    %v444 = vsub.s32 2, %v443
    %v445 = vrot.slane %v432, %v444
    %v446 = vlaneseq
    %v447 = vshrl.u32 %v446, 7
    %v448 = vsub.s32 3, %v447
    %v449 = vrot.slane %v432, %v448
    %vm454 = vcmask 130048
    %v456 = vsel %vm454, %v39, 0
    %458 = vmatprep.subr.mxu0 %v41
    %459 = vmatpush1.msra.mxu0 %v40
    %460 = vmatprep.subr.mxu0 %v45
    %461 = vmatpush1.msra.mxu0 %v44
    %462 = vmatprep.subr.mxu0 %v49
    %463 = vmatpush1.msra.mxu0 %v48
    %464 = vmatprep.subr.mxu0 %v53
    %465 = vmatpush1.msra.mxu0 %v52
    %466 = vmatprep.subr.mxu0 %v57
    %467 = vmatpush1.msra.mxu0 %v56
    %468 = vmatprep.subr.mxu0 %v61
    %469 = vmatpush1.msra.mxu0 %v60
    %470 = vmatprep.subr.mxu0 %v65
    %471 = vmatpush1.msra.mxu0 %v64
    %472 = vmatprep.subr.mxu0 %v69
    %473 = vmatpush1.msra.mxu0 %v68
    %474 = vmatprep.subr.mxu0 %v73
    %475 = vmatpush1.msra.mxu0 %v72
    %476 = vmatprep.subr.mxu0 %v77
    %477 = vmatpush1.msra.mxu0 %v76
    %478 = vmatprep.subr.mxu0 %v81
    %479 = vmatpush1.msra.mxu0 %v80
    %480 = vmatprep.subr.mxu0 %v85
    %481 = vmatpush1.msra.mxu0 %v84
    %482 = vmatprep.subr.mxu0 %v89
    %483 = vmatpush1.msra.mxu0 %v88
    %484 = vmatprep.subr.mxu0 %v93
    %485 = vmatpush1.msra.mxu0 %v92
    %486 = vmatprep.subr.mxu0 %v97
    %487 = vmatpush1.msra.mxu0 %v96
    %488 = vmatprep.subr.mxu0 %v101
    %489 = vmatpush1.msra.mxu0 %v100
    %490 = vmatprep.subr.mxu0 %v105
    %491 = vmatpush1.msra.mxu0 %v104
    %492 = vmatprep.subr.mxu0 %v109
    %493 = vmatpush1.msra.mxu0 %v108
    %494 = vmatprep.subr.mxu0 %v113
    %495 = vmatpush1.msra.mxu0 %v112
    %496 = vmatprep.subr.mxu0 %v117
    %497 = vmatpush1.msra.mxu0 %v116
    %498 = vmatprep.subr.mxu0 %v121
    %499 = vmatpush1.msra.mxu0 %v120
    %500 = vmatprep.subr.mxu0 %v125
    %501 = vmatpush1.msra.mxu0 %v124
    %502 = vmatprep.subr.mxu0 %v129
    %503 = vmatpush1.msra.mxu0 %v128
    %504 = vmatprep.subr.mxu0 %v133
    %505 = vmatpush1.msra.mxu0 %v132
    %506 = vmatprep.subr.mxu0 %v137
    %507 = vmatpush1.msra.mxu0 %v136
    %508 = vmatprep.subr.mxu0 %v141
    %509 = vmatpush1.msra.mxu0 %v140
    %510 = vmatprep.subr.mxu0 %v145
    %511 = vmatpush1.msra.mxu0 %v144
    %512 = vmatprep.subr.mxu0 %v149
    %513 = vmatpush1.msra.mxu0 %v148
    %514 = vmatprep.subr.mxu0 %v153
    %515 = vmatpush1.msra.mxu0 %v152
    %516 = vmatprep.subr.mxu0 %v157
    %517 = vmatpush1.msra.mxu0 %v156
    %518 = vmatprep.subr.mxu0 %v161
    %519 = vmatpush1.msra.mxu0 %v160
    %520 = vmatprep.subr.mxu0 %v165
    %521 = vmatpush1.msra.mxu0 %v164
    %522 = vmatprep.mubr.f32.mxu0 %v34
    %523 = vmatmul.mubr.f32.gmra.mrb[0].mxu0 %v33
    %v524 = vpop.f32.mrb[0].mxu0
    %v525 = vadd.f32 %v437, %v524
    %v526 = vpop.f32.mrb[0].mxu0
    %v527 = vadd.f32 %v441, %v526
    %528 = vdwg.mxu0
    %529 = vmatprep.subr.mxu0 %v169
    %530 = vmatpush1.msra.mxu0 %v168
    %531 = vmatprep.subr.mxu0 %v173
    %532 = vmatpush1.msra.mxu0 %v172
    %533 = vmatprep.subr.mxu0 %v177
    %534 = vmatpush1.msra.mxu0 %v176
    %535 = vmatprep.subr.mxu0 %v181
    %536 = vmatpush1.msra.mxu0 %v180
    %537 = vmatprep.subr.mxu0 %v185
    %538 = vmatpush1.msra.mxu0 %v184
    %539 = vmatprep.subr.mxu0 %v189
    %540 = vmatpush1.msra.mxu0 %v188
    %541 = vmatprep.subr.mxu0 %v193
    %542 = vmatpush1.msra.mxu0 %v192
    %543 = vmatprep.subr.mxu0 %v197
    %544 = vmatpush1.msra.mxu0 %v196
    %545 = vmatprep.subr.mxu0 %v201
    %546 = vmatpush1.msra.mxu0 %v200
    %547 = vmatprep.subr.mxu0 %v205
    %548 = vmatpush1.msra.mxu0 %v204
    %549 = vmatprep.subr.mxu0 %v209
    %550 = vmatpush1.msra.mxu0 %v208
    %551 = vmatprep.subr.mxu0 %v213
    %552 = vmatpush1.msra.mxu0 %v212
    %553 = vmatprep.subr.mxu0 %v217
    %554 = vmatpush1.msra.mxu0 %v216
    %555 = vmatprep.subr.mxu0 %v221
    %556 = vmatpush1.msra.mxu0 %v220
    %557 = vmatprep.subr.mxu0 %v225
    %558 = vmatpush1.msra.mxu0 %v224
    %559 = vmatprep.subr.mxu0 %v229
    %560 = vmatpush1.msra.mxu0 %v228
    %561 = vmatprep.subr.mxu0 %v233
    %562 = vmatpush1.msra.mxu0 %v232
    %563 = vmatprep.subr.mxu0 %v237
    %564 = vmatpush1.msra.mxu0 %v236
    %565 = vmatprep.subr.mxu0 %v241
    %566 = vmatpush1.msra.mxu0 %v240
    %567 = vmatprep.subr.mxu0 %v245
    %568 = vmatpush1.msra.mxu0 %v244
    %569 = vmatprep.subr.mxu0 %v249
    %570 = vmatpush1.msra.mxu0 %v248
    %571 = vmatprep.subr.mxu0 %v253
    %572 = vmatpush1.msra.mxu0 %v252
    %573 = vmatprep.subr.mxu0 %v257
    %574 = vmatpush1.msra.mxu0 %v256
    %575 = vmatprep.subr.mxu0 %v261
    %576 = vmatpush1.msra.mxu0 %v260
    %577 = vmatprep.subr.mxu0 %v265
    %578 = vmatpush1.msra.mxu0 %v264
    %579 = vmatprep.subr.mxu0 %v269
    %580 = vmatpush1.msra.mxu0 %v268
    %581 = vmatprep.subr.mxu0 %v273
    %582 = vmatpush1.msra.mxu0 %v272
    %583 = vmatprep.subr.mxu0 %v277
    %584 = vmatpush1.msra.mxu0 %v276
    %585 = vmatprep.subr.mxu0 %v281
    %586 = vmatpush1.msra.mxu0 %v280
    %587 = vmatprep.subr.mxu0 %v285
    %588 = vmatpush1.msra.mxu0 %v284
    %589 = vmatprep.subr.mxu0 %v289
    %590 = vmatpush1.msra.mxu0 %v288
    %591 = vmatprep.subr.mxu0 %v293
    %592 = vmatpush1.msra.mxu0 %v292
    %593 = vmatprep.mubr.f32.mxu0 %v36
    %594 = vmatmul.mubr.f32.gmra.mrb[0].mxu0 %v35
    %v595 = vpop.f32.mrb[0].mxu0
    %v596 = vadd.f32 %v525, %v595
    %v597 = vpop.f32.mrb[0].mxu0
    %v598 = vadd.f32 %v527, %v597
    %599 = vdwg.mxu0
    %600 = vmatprep.subr.mxu0 %v297
    %601 = vmatpush1.msra.mxu0 %v296
    %602 = vmatprep.subr.mxu0 %v301
    %603 = vmatpush1.msra.mxu0 %v300
    %604 = vmatprep.subr.mxu0 %v305
    %605 = vmatpush1.msra.mxu0 %v304
    %606 = vmatprep.subr.mxu0 %v309
    %607 = vmatpush1.msra.mxu0 %v308
    %608 = vmatprep.subr.mxu0 %v313
    %609 = vmatpush1.msra.mxu0 %v312
    %610 = vmatprep.subr.mxu0 %v317
    %611 = vmatpush1.msra.mxu0 %v316
    %612 = vmatprep.subr.mxu0 %v321
    %613 = vmatpush1.msra.mxu0 %v320
    %614 = vmatprep.subr.mxu0 %v325
    %615 = vmatpush1.msra.mxu0 %v324
    %616 = vmatprep.subr.mxu0 %v329
    %617 = vmatpush1.msra.mxu0 %v328
    %618 = vmatprep.subr.mxu0 %v333
    %619 = vmatpush1.msra.mxu0 %v332
    %620 = vmatprep.subr.mxu0 %v337
    %621 = vmatpush1.msra.mxu0 %v336
    %622 = vmatprep.subr.mxu0 %v341
    %623 = vmatpush1.msra.mxu0 %v340
    %624 = vmatprep.subr.mxu0 %v345
    %625 = vmatpush1.msra.mxu0 %v344
    %626 = vmatprep.subr.mxu0 %v349
    %627 = vmatpush1.msra.mxu0 %v348
    %628 = vmatprep.subr.mxu0 %v353
    %629 = vmatpush1.msra.mxu0 %v352
    %630 = vmatprep.subr.mxu0 %v357
    %631 = vmatpush1.msra.mxu0 %v356
    %632 = vmatprep.subr.mxu0 %v361
    %633 = vmatpush1.msra.mxu0 %v360
    %634 = vmatprep.subr.mxu0 %v365
    %635 = vmatpush1.msra.mxu0 %v364
    %636 = vmatprep.subr.mxu0 %v369
    %637 = vmatpush1.msra.mxu0 %v368
    %638 = vmatprep.subr.mxu0 %v373
    %639 = vmatpush1.msra.mxu0 %v372
    %640 = vmatprep.subr.mxu0 %v377
    %641 = vmatpush1.msra.mxu0 %v376
    %642 = vmatprep.subr.mxu0 %v381
    %643 = vmatpush1.msra.mxu0 %v380
    %644 = vmatprep.subr.mxu0 %v385
    %645 = vmatpush1.msra.mxu0 %v384
    %646 = vmatprep.subr.mxu0 %v389
    %647 = vmatpush1.msra.mxu0 %v388
    %648 = vmatprep.subr.mxu0 %v393
    %649 = vmatpush1.msra.mxu0 %v392
    %650 = vmatprep.subr.mxu0 %v397
    %651 = vmatpush1.msra.mxu0 %v396
    %652 = vmatprep.subr.mxu0 %v401
    %653 = vmatpush1.msra.mxu0 %v400
    %654 = vmatprep.subr.mxu0 %v405
    %655 = vmatpush1.msra.mxu0 %v404
    %656 = vmatprep.subr.mxu0 %v409
    %657 = vmatpush1.msra.mxu0 %v408
    %658 = vmatprep.subr.mxu0 %v413
    %659 = vmatpush1.msra.mxu0 %v412
    %660 = vmatprep.subr.mxu0 %v417
    %661 = vmatpush1.msra.mxu0 %v416
    %662 = vmatprep.subr.mxu0 %v421
    %663 = vmatpush1.msra.mxu0 %v420
    %664 = vmatprep.mubr.f32.mxu0 %v38
    %665 = vmatmul.mubr.f32.gmra.mrb[0].mxu0 %v37
    %v666 = vpop.f32.mrb[0].mxu0
    %v667 = vadd.f32 %v596, %v666
    %v668 = vpop.f32.mrb[0].mxu0
    %v669 = vadd.f32 %v598, %v668
    %670 = vdwg.mxu0
    %671 = vmatprep.subr.mxu0 %v425
    %672 = vmatpush1.msra.mxu0 %v424
    %673 = vmatprep.subr.mxu0 %v429
    %674 = vmatpush1.msra.mxu0 %v428
    %675 = vmatprep.subr.mxu0 0.0
    %676 = vmatpush1.msra.mxu0 0.0
    %677 = vmatprep.subr.mxu0 0.0
    %678 = vmatpush1.msra.mxu0 0.0
    %679 = vmatprep.subr.mxu0 0.0
    %680 = vmatpush1.msra.mxu0 0.0
    %681 = vmatprep.subr.mxu0 0.0
    %682 = vmatpush1.msra.mxu0 0.0
    %683 = vmatprep.subr.mxu0 0.0
    %684 = vmatpush1.msra.mxu0 0.0
    %685 = vmatprep.subr.mxu0 0.0
    %686 = vmatpush1.msra.mxu0 0.0
    %687 = vmatprep.subr.mxu0 0.0
    %688 = vmatpush1.msra.mxu0 0.0
    %689 = vmatprep.subr.mxu0 0.0
    %690 = vmatpush1.msra.mxu0 0.0
    %691 = vmatprep.subr.mxu0 0.0
    %692 = vmatpush1.msra.mxu0 0.0
    %693 = vmatprep.subr.mxu0 0.0
    %694 = vmatpush1.msra.mxu0 0.0
    %695 = vmatprep.subr.mxu0 0.0
    %696 = vmatpush1.msra.mxu0 0.0
    %697 = vmatprep.subr.mxu0 0.0
    %698 = vmatpush1.msra.mxu0 0.0
    %699 = vmatprep.subr.mxu0 0.0
    %700 = vmatpush1.msra.mxu0 0.0
    %701 = vmatprep.subr.mxu0 0.0
    %702 = vmatpush1.msra.mxu0 0.0
    %703 = vmatprep.subr.mxu0 0.0
    %704 = vmatpush1.msra.mxu0 0.0
    %705 = vmatprep.subr.mxu0 0.0
    %706 = vmatpush1.msra.mxu0 0.0
    %707 = vmatprep.subr.mxu0 0.0
    %708 = vmatpush1.msra.mxu0 0.0
    %709 = vmatprep.subr.mxu0 0.0
    %710 = vmatpush1.msra.mxu0 0.0
    %711 = vmatprep.subr.mxu0 0.0
    %712 = vmatpush1.msra.mxu0 0.0
    %713 = vmatprep.subr.mxu0 0.0
    %714 = vmatpush1.msra.mxu0 0.0
    %715 = vmatprep.subr.mxu0 0.0
    %716 = vmatpush1.msra.mxu0 0.0
    %717 = vmatprep.subr.mxu0 0.0
    %718 = vmatpush1.msra.mxu0 0.0
    %719 = vmatprep.subr.mxu0 0.0
    %720 = vmatpush1.msra.mxu0 0.0
    %721 = vmatprep.subr.mxu0 0.0
    %722 = vmatpush1.msra.mxu0 0.0
    %723 = vmatprep.subr.mxu0 0.0
    %724 = vmatpush1.msra.mxu0 0.0
    %725 = vmatprep.subr.mxu0 0.0
    %726 = vmatpush1.msra.mxu0 0.0
    %727 = vmatprep.subr.mxu0 0.0
    %728 = vmatpush1.msra.mxu0 0.0
    %729 = vmatprep.subr.mxu0 0.0
    %730 = vmatpush1.msra.mxu0 0.0
    %731 = vmatprep.subr.mxu0 0.0
    %732 = vmatpush1.msra.mxu0 0.0
    %733 = vmatprep.subr.mxu0 0.0
    %734 = vmatpush1.msra.mxu0 0.0
    %735 = vmatprep.mubr.f32.mxu0 0.0
    %736 = vmatmul.mubr.f32.gmra.mrb[0].mxu0 %v456
    %v737 = vpop.f32.mrb[0].mxu0
    %v738 = vadd.f32 %v667, %v737
    %v739 = vpop.f32.mrb[0].mxu0
    %v740 = vadd.f32 %v669, %v739
    %741 = vdwg.mxu0
    %742 = vmatprep.subr.mxu0 %v43
    %743 = vmatpush1.msra.mxu0 %v42
    %744 = vmatprep.subr.mxu0 %v47
    %745 = vmatpush1.msra.mxu0 %v46
    %746 = vmatprep.subr.mxu0 %v51
    %747 = vmatpush1.msra.mxu0 %v50
    %748 = vmatprep.subr.mxu0 %v55
    %749 = vmatpush1.msra.mxu0 %v54
    %750 = vmatprep.subr.mxu0 %v59
    %751 = vmatpush1.msra.mxu0 %v58
    %752 = vmatprep.subr.mxu0 %v63
    %753 = vmatpush1.msra.mxu0 %v62
    %754 = vmatprep.subr.mxu0 %v67
    %755 = vmatpush1.msra.mxu0 %v66
    %756 = vmatprep.subr.mxu0 %v71
    %757 = vmatpush1.msra.mxu0 %v70
    %758 = vmatprep.subr.mxu0 %v75
    %759 = vmatpush1.msra.mxu0 %v74
    %760 = vmatprep.subr.mxu0 %v79
    %761 = vmatpush1.msra.mxu0 %v78
    %762 = vmatprep.subr.mxu0 %v83
    %763 = vmatpush1.msra.mxu0 %v82
    %764 = vmatprep.subr.mxu0 %v87
    %765 = vmatpush1.msra.mxu0 %v86
    %766 = vmatprep.subr.mxu0 %v91
    %767 = vmatpush1.msra.mxu0 %v90
    %768 = vmatprep.subr.mxu0 %v95
    %769 = vmatpush1.msra.mxu0 %v94
    %770 = vmatprep.subr.mxu0 %v99
    %771 = vmatpush1.msra.mxu0 %v98
    %772 = vmatprep.subr.mxu0 %v103
    %773 = vmatpush1.msra.mxu0 %v102
    %774 = vmatprep.subr.mxu0 %v107
    %775 = vmatpush1.msra.mxu0 %v106
    %776 = vmatprep.subr.mxu0 %v111
    %777 = vmatpush1.msra.mxu0 %v110
    %778 = vmatprep.subr.mxu0 %v115
    %779 = vmatpush1.msra.mxu0 %v114
    %780 = vmatprep.subr.mxu0 %v119
    %781 = vmatpush1.msra.mxu0 %v118
    %782 = vmatprep.subr.mxu0 %v123
    %783 = vmatpush1.msra.mxu0 %v122
    %784 = vmatprep.subr.mxu0 %v127
    %785 = vmatpush1.msra.mxu0 %v126
    %786 = vmatprep.subr.mxu0 %v131
    %787 = vmatpush1.msra.mxu0 %v130
    %788 = vmatprep.subr.mxu0 %v135
    %789 = vmatpush1.msra.mxu0 %v134
    %790 = vmatprep.subr.mxu0 %v139
    %791 = vmatpush1.msra.mxu0 %v138
    %792 = vmatprep.subr.mxu0 %v143
    %793 = vmatpush1.msra.mxu0 %v142
    %794 = vmatprep.subr.mxu0 %v147
    %795 = vmatpush1.msra.mxu0 %v146
    %796 = vmatprep.subr.mxu0 %v151
    %797 = vmatpush1.msra.mxu0 %v150
    %798 = vmatprep.subr.mxu0 %v155
    %799 = vmatpush1.msra.mxu0 %v154
    %800 = vmatprep.subr.mxu0 %v159
    %801 = vmatpush1.msra.mxu0 %v158
    %802 = vmatprep.subr.mxu0 %v163
    %803 = vmatpush1.msra.mxu0 %v162
    %804 = vmatprep.subr.mxu0 %v167
    %805 = vmatpush1.msra.mxu0 %v166
    %806 = vmatprep.mubr.f32.mxu0 %v34
    %807 = vmatmul.mubr.f32.gmra.mrb[0].mxu0 %v33
    %v808 = vpop.f32.mrb[0].mxu0
    %v809 = vadd.f32 %v445, %v808
    %v810 = vpop.f32.mrb[0].mxu0
    %v811 = vadd.f32 %v449, %v810
    %812 = vdwg.mxu0
    %813 = vmatprep.subr.mxu0 %v171
    %814 = vmatpush1.msra.mxu0 %v170
    %815 = vmatprep.subr.mxu0 %v175
    %816 = vmatpush1.msra.mxu0 %v174
    %817 = vmatprep.subr.mxu0 %v179
    %818 = vmatpush1.msra.mxu0 %v178
    %819 = vmatprep.subr.mxu0 %v183
    %820 = vmatpush1.msra.mxu0 %v182
    %821 = vmatprep.subr.mxu0 %v187
    %822 = vmatpush1.msra.mxu0 %v186
    %823 = vmatprep.subr.mxu0 %v191
    %824 = vmatpush1.msra.mxu0 %v190
    %825 = vmatprep.subr.mxu0 %v195
    %826 = vmatpush1.msra.mxu0 %v194
    %827 = vmatprep.subr.mxu0 %v199
    %828 = vmatpush1.msra.mxu0 %v198
    %829 = vmatprep.subr.mxu0 %v203
    %830 = vmatpush1.msra.mxu0 %v202
    %831 = vmatprep.subr.mxu0 %v207
    %832 = vmatpush1.msra.mxu0 %v206
    %833 = vmatprep.subr.mxu0 %v211
    %834 = vmatpush1.msra.mxu0 %v210
    %835 = vmatprep.subr.mxu0 %v215
    %836 = vmatpush1.msra.mxu0 %v214
    %837 = vmatprep.subr.mxu0 %v219
    %838 = vmatpush1.msra.mxu0 %v218
    %839 = vmatprep.subr.mxu0 %v223
    %840 = vmatpush1.msra.mxu0 %v222
    %841 = vmatprep.subr.mxu0 %v227
    %842 = vmatpush1.msra.mxu0 %v226
    %843 = vmatprep.subr.mxu0 %v231
    %844 = vmatpush1.msra.mxu0 %v230
    %845 = vmatprep.subr.mxu0 %v235
    %846 = vmatpush1.msra.mxu0 %v234
    %847 = vmatprep.subr.mxu0 %v239
    %848 = vmatpush1.msra.mxu0 %v238
    %849 = vmatprep.subr.mxu0 %v243
    %850 = vmatpush1.msra.mxu0 %v242
    %851 = vmatprep.subr.mxu0 %v247
    %852 = vmatpush1.msra.mxu0 %v246
    %853 = vmatprep.subr.mxu0 %v251
    %854 = vmatpush1.msra.mxu0 %v250
    %855 = vmatprep.subr.mxu0 %v255
    %856 = vmatpush1.msra.mxu0 %v254
    %857 = vmatprep.subr.mxu0 %v259
    %858 = vmatpush1.msra.mxu0 %v258
    %859 = vmatprep.subr.mxu0 %v263
    %860 = vmatpush1.msra.mxu0 %v262
    %861 = vmatprep.subr.mxu0 %v267
    %862 = vmatpush1.msra.mxu0 %v266
    %863 = vmatprep.subr.mxu0 %v271
    %864 = vmatpush1.msra.mxu0 %v270
    %865 = vmatprep.subr.mxu0 %v275
    %866 = vmatpush1.msra.mxu0 %v274
    %867 = vmatprep.subr.mxu0 %v279
    %868 = vmatpush1.msra.mxu0 %v278
    %869 = vmatprep.subr.mxu0 %v283
    %870 = vmatpush1.msra.mxu0 %v282
    %871 = vmatprep.subr.mxu0 %v287
    %872 = vmatpush1.msra.mxu0 %v286
    %873 = vmatprep.subr.mxu0 %v291
    %874 = vmatpush1.msra.mxu0 %v290
    %875 = vmatprep.subr.mxu0 %v295
    %876 = vmatpush1.msra.mxu0 %v294
    %877 = vmatprep.mubr.f32.mxu0 %v36
    %878 = vmatmul.mubr.f32.gmra.mrb[0].mxu0 %v35
    %v879 = vpop.f32.mrb[0].mxu0
    %v880 = vadd.f32 %v809, %v879
    %v881 = vpop.f32.mrb[0].mxu0
    %v882 = vadd.f32 %v811, %v881
    %883 = vdwg.mxu0
    %884 = vmatprep.subr.mxu0 %v299
    %885 = vmatpush1.msra.mxu0 %v298
    %886 = vmatprep.subr.mxu0 %v303
    %887 = vmatpush1.msra.mxu0 %v302
    %888 = vmatprep.subr.mxu0 %v307
    %889 = vmatpush1.msra.mxu0 %v306
    %890 = vmatprep.subr.mxu0 %v311
    %891 = vmatpush1.msra.mxu0 %v310
    %892 = vmatprep.subr.mxu0 %v315
    %893 = vmatpush1.msra.mxu0 %v314
    %894 = vmatprep.subr.mxu0 %v319
    %895 = vmatpush1.msra.mxu0 %v318
    %896 = vmatprep.subr.mxu0 %v323
    %897 = vmatpush1.msra.mxu0 %v322
    %898 = vmatprep.subr.mxu0 %v327
    %899 = vmatpush1.msra.mxu0 %v326
    %900 = vmatprep.subr.mxu0 %v331
    %901 = vmatpush1.msra.mxu0 %v330
    %902 = vmatprep.subr.mxu0 %v335
    %903 = vmatpush1.msra.mxu0 %v334
    %904 = vmatprep.subr.mxu0 %v339
    %905 = vmatpush1.msra.mxu0 %v338
    %906 = vmatprep.subr.mxu0 %v343
    %907 = vmatpush1.msra.mxu0 %v342
    %908 = vmatprep.subr.mxu0 %v347
    %909 = vmatpush1.msra.mxu0 %v346
    %910 = vmatprep.subr.mxu0 %v351
    %911 = vmatpush1.msra.mxu0 %v350
    %912 = vmatprep.subr.mxu0 %v355
    %913 = vmatpush1.msra.mxu0 %v354
    %914 = vmatprep.subr.mxu0 %v359
    %915 = vmatpush1.msra.mxu0 %v358
    %916 = vmatprep.subr.mxu0 %v363
    %917 = vmatpush1.msra.mxu0 %v362
    %918 = vmatprep.subr.mxu0 %v367
    %919 = vmatpush1.msra.mxu0 %v366
    %920 = vmatprep.subr.mxu0 %v371
    %921 = vmatpush1.msra.mxu0 %v370
    %922 = vmatprep.subr.mxu0 %v375
    %923 = vmatpush1.msra.mxu0 %v374
    %924 = vmatprep.subr.mxu0 %v379
    %925 = vmatpush1.msra.mxu0 %v378
    %926 = vmatprep.subr.mxu0 %v383
    %927 = vmatpush1.msra.mxu0 %v382
    %928 = vmatprep.subr.mxu0 %v387
    %929 = vmatpush1.msra.mxu0 %v386
    %930 = vmatprep.subr.mxu0 %v391
    %931 = vmatpush1.msra.mxu0 %v390
    %932 = vmatprep.subr.mxu0 %v395
    %933 = vmatpush1.msra.mxu0 %v394
    %934 = vmatprep.subr.mxu0 %v399
    %935 = vmatpush1.msra.mxu0 %v398
    %936 = vmatprep.subr.mxu0 %v403
    %937 = vmatpush1.msra.mxu0 %v402
    %938 = vmatprep.subr.mxu0 %v407
    %939 = vmatpush1.msra.mxu0 %v406
    %940 = vmatprep.subr.mxu0 %v411
    %941 = vmatpush1.msra.mxu0 %v410
    %942 = vmatprep.subr.mxu0 %v415
    %943 = vmatpush1.msra.mxu0 %v414
    %944 = vmatprep.subr.mxu0 %v419
    %945 = vmatpush1.msra.mxu0 %v418
    %946 = vmatprep.subr.mxu0 %v423
    %947 = vmatpush1.msra.mxu0 %v422
    %948 = vmatprep.mubr.f32.mxu0 %v38
    %949 = vmatmul.mubr.f32.gmra.mrb[0].mxu0 %v37
    %v950 = vpop.f32.mrb[0].mxu0
    %v951 = vadd.f32 %v880, %v950
    %v952 = vpop.f32.mrb[0].mxu0
    %v953 = vadd.f32 %v882, %v952
    %954 = vdwg.mxu0
    %955 = vmatprep.subr.mxu0 %v427
    %956 = vmatpush1.msra.mxu0 %v426
    %957 = vmatprep.subr.mxu0 %v431
    %958 = vmatpush1.msra.mxu0 %v430
    %959 = vmatprep.subr.mxu0 0.0
    %960 = vmatpush1.msra.mxu0 0.0
    %961 = vmatprep.subr.mxu0 0.0
    %962 = vmatpush1.msra.mxu0 0.0
    %963 = vmatprep.subr.mxu0 0.0
    %964 = vmatpush1.msra.mxu0 0.0
    %965 = vmatprep.subr.mxu0 0.0
    %966 = vmatpush1.msra.mxu0 0.0
    %967 = vmatprep.subr.mxu0 0.0
    %968 = vmatpush1.msra.mxu0 0.0
    %969 = vmatprep.subr.mxu0 0.0
    %970 = vmatpush1.msra.mxu0 0.0
    %971 = vmatprep.subr.mxu0 0.0
    %972 = vmatpush1.msra.mxu0 0.0
    %973 = vmatprep.subr.mxu0 0.0
    %974 = vmatpush1.msra.mxu0 0.0
    %975 = vmatprep.subr.mxu0 0.0
    %976 = vmatpush1.msra.mxu0 0.0
    %977 = vmatprep.subr.mxu0 0.0
    %978 = vmatpush1.msra.mxu0 0.0
    %979 = vmatprep.subr.mxu0 0.0
    %980 = vmatpush1.msra.mxu0 0.0
    %981 = vmatprep.subr.mxu0 0.0
    %982 = vmatpush1.msra.mxu0 0.0
    %983 = vmatprep.subr.mxu0 0.0
    %984 = vmatpush1.msra.mxu0 0.0
    %985 = vmatprep.subr.mxu0 0.0
    %986 = vmatpush1.msra.mxu0 0.0
    %987 = vmatprep.subr.mxu0 0.0
    %988 = vmatpush1.msra.mxu0 0.0
    %989 = vmatprep.subr.mxu0 0.0
    %990 = vmatpush1.msra.mxu0 0.0
    %991 = vmatprep.subr.mxu0 0.0
    %992 = vmatpush1.msra.mxu0 0.0
    %993 = vmatprep.subr.mxu0 0.0
    %994 = vmatpush1.msra.mxu0 0.0
    %995 = vmatprep.subr.mxu0 0.0
    %996 = vmatpush1.msra.mxu0 0.0
    %997 = vmatprep.subr.mxu0 0.0
    %998 = vmatpush1.msra.mxu0 0.0
    %999 = vmatprep.subr.mxu0 0.0
    %1000 = vmatpush1.msra.mxu0 0.0
    %1001 = vmatprep.subr.mxu0 0.0
    %1002 = vmatpush1.msra.mxu0 0.0
    %1003 = vmatprep.subr.mxu0 0.0
    %1004 = vmatpush1.msra.mxu0 0.0
    %1005 = vmatprep.subr.mxu0 0.0
    %1006 = vmatpush1.msra.mxu0 0.0
    %1007 = vmatprep.subr.mxu0 0.0
    %1008 = vmatpush1.msra.mxu0 0.0
    %1009 = vmatprep.subr.mxu0 0.0
    %1010 = vmatpush1.msra.mxu0 0.0
    %1011 = vmatprep.subr.mxu0 0.0
    %1012 = vmatpush1.msra.mxu0 0.0
    %1013 = vmatprep.subr.mxu0 0.0
    %1014 = vmatpush1.msra.mxu0 0.0
    %1015 = vmatprep.subr.mxu0 0.0
    %1016 = vmatpush1.msra.mxu0 0.0
    %1017 = vmatprep.subr.mxu0 0.0
    %1018 = vmatpush1.msra.mxu0 0.0
    %1019 = vmatprep.mubr.f32.mxu0 0.0
    %1020 = vmatmul.mubr.f32.gmra.mrb[0].mxu0 %v456
    %v1021 = vpop.f32.mrb[0].mxu0
    %v1022 = vadd.f32 %v951, %v1021
    %v1023 = vpop.f32.mrb[0].mxu0
    %v1024 = vadd.f32 %v953, %v1023
    %1025 = vdwg.mxu0
    %v1026 = vmax.f32 %v738, 0.0
    %v1027 = vmax.f32 %v740, 0.0
    %v1028 = vmax.f32 %v1022, 0.0
    %v1029 = vmax.f32 %v1024, 0.0
    %v1030 = vld [vmem:[%s3] sm:$0xff]
    %v1031 = vld [vmem:[%s3 + $0x8] sm:$0xff]
    %v1032 = vld [vmem:[%s3 + $0x10] sm:$0xff]
    %v1033 = vld [vmem:[%s3 + $0x18] sm:$0xff]
    %v1034 = vld [vmem:[%s3 + $0x20] sm:$0xff]
    %v1035 = vld [vmem:[%s3 + $0x28] sm:$0xff]
    %v1036 = vld [vmem:[%s3 + $0x30] sm:$0xff]
    %v1037 = vld [vmem:[%s3 + $0x38] sm:$0xff]
    %v1038 = vld [vmem:[%s3 + $0x40] sm:$0xff]
    %v1039 = vld [vmem:[%s3 + $0x48] sm:$0xff]
    %v1040 = vld [vmem:[%s3 + $0x50] sm:$0xff]
    %v1041 = vld [vmem:[%s3 + $0x58] sm:$0xff]
    %v1042 = vld [vmem:[%s3 + $0x60] sm:$0xff]
    %v1043 = vld [vmem:[%s3 + $0x68] sm:$0xff]
    %v1044 = vld [vmem:[%s3 + $0x70] sm:$0xff]
    %v1045 = vld [vmem:[%s3 + $0x78] sm:$0xff]
    %v1046 = vld [vmem:[%s3 + $0x80] sm:$0xff]
    %v1047 = vld [vmem:[%s3 + $0x88] sm:$0xff]
    %v1048 = vld [vmem:[%s3 + $0x90] sm:$0xff]
    %v1049 = vld [vmem:[%s3 + $0x98] sm:$0xff]
    %v1050 = vld [vmem:[%s3 + $0xa0] sm:$0xff]
    %v1051 = vld [vmem:[%s3 + $0xa8] sm:$0xff]
    %v1052 = vld [vmem:[%s3 + $0xb0] sm:$0xff]
    %v1053 = vld [vmem:[%s3 + $0xb8] sm:$0xff]
    %v1054 = vld [vmem:[%s3 + $0xc0] sm:$0xff]
    %v1055 = vld [vmem:[%s3 + $0xc8] sm:$0xff]
    %v1056 = vld [vmem:[%s3 + $0xd0] sm:$0xff]
    %v1057 = vld [vmem:[%s3 + $0xd8] sm:$0xff]
    %v1058 = vld [vmem:[%s3 + $0xe0] sm:$0xff]
    %v1059 = vld [vmem:[%s3 + $0xe8] sm:$0xff]
    %v1060 = vld [vmem:[%s3 + $0xf0] sm:$0xff]
    %v1061 = vld [vmem:[%s3 + $0xf8] sm:$0xff]
    %v1062 = vld [vmem:[%s3 + $0x100] sm:$0xff]
    %v1063 = vld [vmem:[%s3 + $0x108] sm:$0xff]
    %v1064 = vld [vmem:[%s3 + $0x110] sm:$0xff]
    %v1065 = vld [vmem:[%s3 + $0x118] sm:$0xff]
    %v1066 = vld [vmem:[%s3 + $0x120] sm:$0xff]
    %v1067 = vld [vmem:[%s3 + $0x128] sm:$0xff]
    %v1068 = vld [vmem:[%s3 + $0x130] sm:$0xff]
    %v1069 = vld [vmem:[%s3 + $0x138] sm:$0xff]
    %v1070 = vld [vmem:[%s3 + $0x140] sm:$0xff]
    %v1071 = vld [vmem:[%s3 + $0x148] sm:$0xff]
    %v1072 = vld [vmem:[%s3 + $0x150] sm:$0xff]
    %v1073 = vld [vmem:[%s3 + $0x158] sm:$0xff]
    %v1074 = vld [vmem:[%s3 + $0x160] sm:$0xff]
    %v1075 = vld [vmem:[%s3 + $0x168] sm:$0xff]
    %v1076 = vld [vmem:[%s3 + $0x170] sm:$0xff]
    %v1077 = vld [vmem:[%s3 + $0x178] sm:$0xff]
    %v1078 = vld [vmem:[%s3 + $0x180] sm:$0xff]
    %v1079 = vld [vmem:[%s3 + $0x188] sm:$0xff]
    %v1080 = vld [vmem:[%s3 + $0x190] sm:$0xff]
    %v1081 = vld [vmem:[%s3 + $0x198] sm:$0xff]
    %v1082 = vld [vmem:[%s3 + $0x1a0] sm:$0xff]
    %v1083 = vld [vmem:[%s3 + $0x1a8] sm:$0xff]
    %v1084 = vld [vmem:[%s3 + $0x1b0] sm:$0xff]
    %v1085 = vld [vmem:[%s3 + $0x1b8] sm:$0xff]
    %v1086 = vld [vmem:[%s3 + $0x1c0] sm:$0xff]
    %v1087 = vld [vmem:[%s3 + $0x1c8] sm:$0xff]
    %v1088 = vld [vmem:[%s3 + $0x1d0] sm:$0xff]
    %v1089 = vld [vmem:[%s3 + $0x1d8] sm:$0xff]
    %v1090 = vld [vmem:[%s3 + $0x1e0] sm:$0xff]
    %v1091 = vld [vmem:[%s3 + $0x1e8] sm:$0xff]
    %v1092 = vld [vmem:[%s3 + $0x1f0] sm:$0xff]
    %v1093 = vld [vmem:[%s3 + $0x1f8] sm:$0xff]
    %v1094 = vld [vmem:[%s4] sm:$0x1]
    %v1096 = vlaneseq
    %v1097 = vshrl.u32 %v1096, 7
    %v1098 = vsub.s32 0, %v1097
    %v1099 = vrot.slane %v1094, %v1098
    %1101 = vmatprep.subr.mxu0 0.0
    %1102 = vmatpush1.msra.mxu0 %v1030
    %1103 = vmatprep.subr.mxu0 0.0
    %1104 = vmatpush1.msra.mxu0 %v1031
    %1105 = vmatprep.subr.mxu0 0.0
    %1106 = vmatpush1.msra.mxu0 %v1032
    %1107 = vmatprep.subr.mxu0 0.0
    %1108 = vmatpush1.msra.mxu0 %v1033
    %1109 = vmatprep.subr.mxu0 0.0
    %1110 = vmatpush1.msra.mxu0 %v1034
    %1111 = vmatprep.subr.mxu0 0.0
    %1112 = vmatpush1.msra.mxu0 %v1035
    %1113 = vmatprep.subr.mxu0 0.0
    %1114 = vmatpush1.msra.mxu0 %v1036
    %1115 = vmatprep.subr.mxu0 0.0
    %1116 = vmatpush1.msra.mxu0 %v1037
    %1117 = vmatprep.subr.mxu0 0.0
    %1118 = vmatpush1.msra.mxu0 %v1038
    %1119 = vmatprep.subr.mxu0 0.0
    %1120 = vmatpush1.msra.mxu0 %v1039
    %1121 = vmatprep.subr.mxu0 0.0
    %1122 = vmatpush1.msra.mxu0 %v1040
    %1123 = vmatprep.subr.mxu0 0.0
    %1124 = vmatpush1.msra.mxu0 %v1041
    %1125 = vmatprep.subr.mxu0 0.0
    %1126 = vmatpush1.msra.mxu0 %v1042
    %1127 = vmatprep.subr.mxu0 0.0
    %1128 = vmatpush1.msra.mxu0 %v1043
    %1129 = vmatprep.subr.mxu0 0.0
    %1130 = vmatpush1.msra.mxu0 %v1044
    %1131 = vmatprep.subr.mxu0 0.0
    %1132 = vmatpush1.msra.mxu0 %v1045
    %1133 = vmatprep.subr.mxu0 0.0
    %1134 = vmatpush1.msra.mxu0 %v1046
    %1135 = vmatprep.subr.mxu0 0.0
    %1136 = vmatpush1.msra.mxu0 %v1047
    %1137 = vmatprep.subr.mxu0 0.0
    %1138 = vmatpush1.msra.mxu0 %v1048
    %1139 = vmatprep.subr.mxu0 0.0
    %1140 = vmatpush1.msra.mxu0 %v1049
    %1141 = vmatprep.subr.mxu0 0.0
    %1142 = vmatpush1.msra.mxu0 %v1050
    %1143 = vmatprep.subr.mxu0 0.0
    %1144 = vmatpush1.msra.mxu0 %v1051
    %1145 = vmatprep.subr.mxu0 0.0
    %1146 = vmatpush1.msra.mxu0 %v1052
    %1147 = vmatprep.subr.mxu0 0.0
    %1148 = vmatpush1.msra.mxu0 %v1053
    %1149 = vmatprep.subr.mxu0 0.0
    %1150 = vmatpush1.msra.mxu0 %v1054
    %1151 = vmatprep.subr.mxu0 0.0
    %1152 = vmatpush1.msra.mxu0 %v1055
    %1153 = vmatprep.subr.mxu0 0.0
    %1154 = vmatpush1.msra.mxu0 %v1056
    %1155 = vmatprep.subr.mxu0 0.0
    %1156 = vmatpush1.msra.mxu0 %v1057
    %1157 = vmatprep.subr.mxu0 0.0
    %1158 = vmatpush1.msra.mxu0 %v1058
    %1159 = vmatprep.subr.mxu0 0.0
    %1160 = vmatpush1.msra.mxu0 %v1059
    %1161 = vmatprep.subr.mxu0 0.0
    %1162 = vmatpush1.msra.mxu0 %v1060
    %1163 = vmatprep.subr.mxu0 0.0
    %1164 = vmatpush1.msra.mxu0 %v1061
    %1165 = vmatprep.mubr.f32.mxu0 %v1027
    %1166 = vmatmul.mubr.f32.gmra.mrb[0].mxu0 %v1026
    %v1167 = vpop.f32.mrb[0].mxu0
    %v1168 = vadd.f32 %v1099, %v1167
    %v1169 = vpop.f32.mrb[0].mxu0
    %1170 = vdwg.mxu0
    %1171 = vmatprep.subr.mxu0 0.0
    %1172 = vmatpush1.msra.mxu0 %v1062
    %1173 = vmatprep.subr.mxu0 0.0
    %1174 = vmatpush1.msra.mxu0 %v1063
    %1175 = vmatprep.subr.mxu0 0.0
    %1176 = vmatpush1.msra.mxu0 %v1064
    %1177 = vmatprep.subr.mxu0 0.0
    %1178 = vmatpush1.msra.mxu0 %v1065
    %1179 = vmatprep.subr.mxu0 0.0
    %1180 = vmatpush1.msra.mxu0 %v1066
    %1181 = vmatprep.subr.mxu0 0.0
    %1182 = vmatpush1.msra.mxu0 %v1067
    %1183 = vmatprep.subr.mxu0 0.0
    %1184 = vmatpush1.msra.mxu0 %v1068
    %1185 = vmatprep.subr.mxu0 0.0
    %1186 = vmatpush1.msra.mxu0 %v1069
    %1187 = vmatprep.subr.mxu0 0.0
    %1188 = vmatpush1.msra.mxu0 %v1070
    %1189 = vmatprep.subr.mxu0 0.0
    %1190 = vmatpush1.msra.mxu0 %v1071
    %1191 = vmatprep.subr.mxu0 0.0
    %1192 = vmatpush1.msra.mxu0 %v1072
    %1193 = vmatprep.subr.mxu0 0.0
    %1194 = vmatpush1.msra.mxu0 %v1073
    %1195 = vmatprep.subr.mxu0 0.0
    %1196 = vmatpush1.msra.mxu0 %v1074
    %1197 = vmatprep.subr.mxu0 0.0
    %1198 = vmatpush1.msra.mxu0 %v1075
    %1199 = vmatprep.subr.mxu0 0.0
    %1200 = vmatpush1.msra.mxu0 %v1076
    %1201 = vmatprep.subr.mxu0 0.0
    %1202 = vmatpush1.msra.mxu0 %v1077
    %1203 = vmatprep.subr.mxu0 0.0
    %1204 = vmatpush1.msra.mxu0 %v1078
    %1205 = vmatprep.subr.mxu0 0.0
    %1206 = vmatpush1.msra.mxu0 %v1079
    %1207 = vmatprep.subr.mxu0 0.0
    %1208 = vmatpush1.msra.mxu0 %v1080
    %1209 = vmatprep.subr.mxu0 0.0
    %1210 = vmatpush1.msra.mxu0 %v1081
    %1211 = vmatprep.subr.mxu0 0.0
    %1212 = vmatpush1.msra.mxu0 %v1082
    %1213 = vmatprep.subr.mxu0 0.0
    %1214 = vmatpush1.msra.mxu0 %v1083
    %1215 = vmatprep.subr.mxu0 0.0
    %1216 = vmatpush1.msra.mxu0 %v1084
    %1217 = vmatprep.subr.mxu0 0.0
    %1218 = vmatpush1.msra.mxu0 %v1085
    %1219 = vmatprep.subr.mxu0 0.0
    %1220 = vmatpush1.msra.mxu0 %v1086
    %1221 = vmatprep.subr.mxu0 0.0
    %1222 = vmatpush1.msra.mxu0 %v1087
    %1223 = vmatprep.subr.mxu0 0.0
    %1224 = vmatpush1.msra.mxu0 %v1088
    %1225 = vmatprep.subr.mxu0 0.0
    %1226 = vmatpush1.msra.mxu0 %v1089
    %1227 = vmatprep.subr.mxu0 0.0
    %1228 = vmatpush1.msra.mxu0 %v1090
    %1229 = vmatprep.subr.mxu0 0.0
    %1230 = vmatpush1.msra.mxu0 %v1091
    %1231 = vmatprep.subr.mxu0 0.0
    %1232 = vmatpush1.msra.mxu0 %v1092
    %1233 = vmatprep.subr.mxu0 0.0
    %1234 = vmatpush1.msra.mxu0 %v1093
    %1235 = vmatprep.mubr.f32.mxu0 %v1029
    %1236 = vmatmul.mubr.f32.gmra.mrb[0].mxu0 %v1028
    %v1237 = vpop.f32.mrb[0].mxu0
    %v1238 = vadd.f32 %v1168, %v1237
    %v1239 = vpop.f32.mrb[0].mxu0
    %1240 = vdwg.mxu0
    %v1241 = vmax.f32 %v1238, 0.0
    %v1242 = vld [vmem:[%s5] sm:$0xff]
    %v1243 = vld [vmem:[%s5 + $0x8] sm:$0xff]
    %v1244 = vld [vmem:[%s5 + $0x10] sm:$0xff]
    %v1245 = vld [vmem:[%s5 + $0x18] sm:$0xff]
    %v1246 = vld [vmem:[%s5 + $0x20] sm:$0xff]
    %v1247 = vld [vmem:[%s5 + $0x28] sm:$0xff]
    %v1248 = vld [vmem:[%s5 + $0x30] sm:$0xff]
    %v1249 = vld [vmem:[%s5 + $0x38] sm:$0xff]
    %v1250 = vld [vmem:[%s5 + $0x40] sm:$0xff]
    %v1251 = vld [vmem:[%s5 + $0x48] sm:$0xff]
    %v1252 = vld [vmem:[%s5 + $0x50] sm:$0xff]
    %v1253 = vld [vmem:[%s5 + $0x58] sm:$0xff]
    %v1254 = vld [vmem:[%s5 + $0x60] sm:$0xff]
    %v1255 = vld [vmem:[%s5 + $0x68] sm:$0xff]
    %v1256 = vld [vmem:[%s5 + $0x70] sm:$0xff]
    %v1257 = vld [vmem:[%s5 + $0x78] sm:$0xff]
    %v1258 = vld [vmem:[%s6] sm:$0x1]
    %v1260 = vlaneseq
    %v1261 = vshrl.u32 %v1260, 7
    %v1262 = vsub.s32 0, %v1261
    %v1263 = vrot.slane %v1258, %v1262
    %1265 = vmatprep.subr.mxu0 0.0
    %1266 = vmatpush1.msra.mxu0 %v1242
    %1267 = vmatprep.subr.mxu0 0.0
    %1268 = vmatpush1.msra.mxu0 %v1243
    %1269 = vmatprep.subr.mxu0 0.0
    %1270 = vmatpush1.msra.mxu0 %v1244
    %1271 = vmatprep.subr.mxu0 0.0
    %1272 = vmatpush1.msra.mxu0 %v1245
    %1273 = vmatprep.subr.mxu0 0.0
    %1274 = vmatpush1.msra.mxu0 %v1246
    %1275 = vmatprep.subr.mxu0 0.0
    %1276 = vmatpush1.msra.mxu0 %v1247
    %1277 = vmatprep.subr.mxu0 0.0
    %1278 = vmatpush1.msra.mxu0 %v1248
    %1279 = vmatprep.subr.mxu0 0.0
    %1280 = vmatpush1.msra.mxu0 %v1249
    %1281 = vmatprep.subr.mxu0 0.0
    %1282 = vmatpush1.msra.mxu0 %v1250
    %1283 = vmatprep.subr.mxu0 0.0
    %1284 = vmatpush1.msra.mxu0 %v1251
    %1285 = vmatprep.subr.mxu0 0.0
    %1286 = vmatpush1.msra.mxu0 %v1252
    %1287 = vmatprep.subr.mxu0 0.0
    %1288 = vmatpush1.msra.mxu0 %v1253
    %1289 = vmatprep.subr.mxu0 0.0
    %1290 = vmatpush1.msra.mxu0 %v1254
    %1291 = vmatprep.subr.mxu0 0.0
    %1292 = vmatpush1.msra.mxu0 %v1255
    %1293 = vmatprep.subr.mxu0 0.0
    %1294 = vmatpush1.msra.mxu0 %v1256
    %1295 = vmatprep.subr.mxu0 0.0
    %1296 = vmatpush1.msra.mxu0 %v1257
    %1297 = vmatprep.subr.mxu0 0.0
    %1298 = vmatpush1.msra.mxu0 0.0
    %1299 = vmatprep.subr.mxu0 0.0
    %1300 = vmatpush1.msra.mxu0 0.0
    %1301 = vmatprep.subr.mxu0 0.0
    %1302 = vmatpush1.msra.mxu0 0.0
    %1303 = vmatprep.subr.mxu0 0.0
    %1304 = vmatpush1.msra.mxu0 0.0
    %1305 = vmatprep.subr.mxu0 0.0
    %1306 = vmatpush1.msra.mxu0 0.0
    %1307 = vmatprep.subr.mxu0 0.0
    %1308 = vmatpush1.msra.mxu0 0.0
    %1309 = vmatprep.subr.mxu0 0.0
    %1310 = vmatpush1.msra.mxu0 0.0
    %1311 = vmatprep.subr.mxu0 0.0
    %1312 = vmatpush1.msra.mxu0 0.0
    %1313 = vmatprep.subr.mxu0 0.0
    %1314 = vmatpush1.msra.mxu0 0.0
    %1315 = vmatprep.subr.mxu0 0.0
    %1316 = vmatpush1.msra.mxu0 0.0
    %1317 = vmatprep.subr.mxu0 0.0
    %1318 = vmatpush1.msra.mxu0 0.0
    %1319 = vmatprep.subr.mxu0 0.0
    %1320 = vmatpush1.msra.mxu0 0.0
    %1321 = vmatprep.subr.mxu0 0.0
    %1322 = vmatpush1.msra.mxu0 0.0
    %1323 = vmatprep.subr.mxu0 0.0
    %1324 = vmatpush1.msra.mxu0 0.0
    %1325 = vmatprep.subr.mxu0 0.0
    %1326 = vmatpush1.msra.mxu0 0.0
    %1327 = vmatprep.subr.mxu0 0.0
    %1328 = vmatpush1.msra.mxu0 0.0
    %1329 = vmatprep.mubr.f32.mxu0 0.0
    %1330 = vmatmul.mubr.f32.gmra.mrb[0].mxu0 %v1241
    %v1331 = vpop.f32.mrb[0].mxu0
    %v1332 = vadd.f32 %v1263, %v1331
    %v1333 = vpop.f32.mrb[0].mxu0
    %1334 = vdwg.mxu0
    %v1335 = vmax.f32 %v1332, 0.0
    %v1336 = vld [vmem:[%s7] sm:$0xff]
    %v1337 = vld [vmem:[%s7 + $0x8] sm:$0xff]
    %v1338 = vld [vmem:[%s7 + $0x10] sm:$0xff]
    %v1339 = vld [vmem:[%s7 + $0x18] sm:$0xff]
    %v1340 = vld [vmem:[%s7 + $0x20] sm:$0xff]
    %v1341 = vld [vmem:[%s7 + $0x28] sm:$0xff]
    %v1342 = vld [vmem:[%s7 + $0x30] sm:$0xff]
    %v1343 = vld [vmem:[%s7 + $0x38] sm:$0xff]
    %v1344 = vld [vmem:[%s7 + $0x40] sm:$0xff]
    %v1345 = vld [vmem:[%s7 + $0x48] sm:$0xff]
    %v1346 = vld [vmem:[%s7 + $0x50] sm:$0xff]
    %v1347 = vld [vmem:[%s7 + $0x58] sm:$0xff]
    %v1348 = vld [vmem:[%s7 + $0x60] sm:$0xff]
    %v1349 = vld [vmem:[%s7 + $0x68] sm:$0xff]
    %v1350 = vld [vmem:[%s7 + $0x70] sm:$0xff]
    %v1351 = vld [vmem:[%s7 + $0x78] sm:$0xff]
    %v1352 = vld [vmem:[%s8] sm:$0x1]
    %v1354 = vlaneseq
    %v1355 = vshrl.u32 %v1354, 7
    %v1356 = vsub.s32 0, %v1355
    %v1357 = vrot.slane %v1352, %v1356
    %1359 = vmatprep.subr.mxu0 0.0
    %1360 = vmatpush1.msra.mxu0 %v1336
    %1361 = vmatprep.subr.mxu0 0.0
    %1362 = vmatpush1.msra.mxu0 %v1337
    %1363 = vmatprep.subr.mxu0 0.0
    %1364 = vmatpush1.msra.mxu0 %v1338
    %1365 = vmatprep.subr.mxu0 0.0
    %1366 = vmatpush1.msra.mxu0 %v1339
    %1367 = vmatprep.subr.mxu0 0.0
    %1368 = vmatpush1.msra.mxu0 %v1340
    %1369 = vmatprep.subr.mxu0 0.0
    %1370 = vmatpush1.msra.mxu0 %v1341
    %1371 = vmatprep.subr.mxu0 0.0
    %1372 = vmatpush1.msra.mxu0 %v1342
    %1373 = vmatprep.subr.mxu0 0.0
    %1374 = vmatpush1.msra.mxu0 %v1343
    %1375 = vmatprep.subr.mxu0 0.0
    %1376 = vmatpush1.msra.mxu0 %v1344
    %1377 = vmatprep.subr.mxu0 0.0
    %1378 = vmatpush1.msra.mxu0 %v1345
    %1379 = vmatprep.subr.mxu0 0.0
    %1380 = vmatpush1.msra.mxu0 %v1346
    %1381 = vmatprep.subr.mxu0 0.0
    %1382 = vmatpush1.msra.mxu0 %v1347
    %1383 = vmatprep.subr.mxu0 0.0
    %1384 = vmatpush1.msra.mxu0 %v1348
    %1385 = vmatprep.subr.mxu0 0.0
    %1386 = vmatpush1.msra.mxu0 %v1349
    %1387 = vmatprep.subr.mxu0 0.0
    %1388 = vmatpush1.msra.mxu0 %v1350
    %1389 = vmatprep.subr.mxu0 0.0
    %1390 = vmatpush1.msra.mxu0 %v1351
    %1391 = vmatprep.subr.mxu0 0.0
    %1392 = vmatpush1.msra.mxu0 0.0
    %1393 = vmatprep.subr.mxu0 0.0
    %1394 = vmatpush1.msra.mxu0 0.0
    %1395 = vmatprep.subr.mxu0 0.0
    %1396 = vmatpush1.msra.mxu0 0.0
    %1397 = vmatprep.subr.mxu0 0.0
    %1398 = vmatpush1.msra.mxu0 0.0
    %1399 = vmatprep.subr.mxu0 0.0
    %1400 = vmatpush1.msra.mxu0 0.0
    %1401 = vmatprep.subr.mxu0 0.0
    %1402 = vmatpush1.msra.mxu0 0.0
    %1403 = vmatprep.subr.mxu0 0.0
    %1404 = vmatpush1.msra.mxu0 0.0
    %1405 = vmatprep.subr.mxu0 0.0
    %1406 = vmatpush1.msra.mxu0 0.0
    %1407 = vmatprep.subr.mxu0 0.0
    %1408 = vmatpush1.msra.mxu0 0.0
    %1409 = vmatprep.subr.mxu0 0.0
    %1410 = vmatpush1.msra.mxu0 0.0
    %1411 = vmatprep.subr.mxu0 0.0
    %1412 = vmatpush1.msra.mxu0 0.0
    %1413 = vmatprep.subr.mxu0 0.0
    %1414 = vmatpush1.msra.mxu0 0.0
    %1415 = vmatprep.subr.mxu0 0.0
    %1416 = vmatpush1.msra.mxu0 0.0
    %1417 = vmatprep.subr.mxu0 0.0
    %1418 = vmatpush1.msra.mxu0 0.0
    %1419 = vmatprep.subr.mxu0 0.0
    %1420 = vmatpush1.msra.mxu0 0.0
    %1421 = vmatprep.subr.mxu0 0.0
    %1422 = vmatpush1.msra.mxu0 0.0
    %1423 = vmatprep.mubr.f32.mxu0 0.0
    %1424 = vmatmul.mubr.f32.gmra.mrb[0].mxu0 %v1335
    %v1425 = vpop.f32.mrb[0].mxu0
    %v1426 = vadd.f32 %v1357, %v1425
    %v1427 = vpop.f32.mrb[0].mxu0
    %1428 = vdwg.mxu0
    %1429 = vst [vmem:[#allocation2] sm:$0xff] %v1426
    // Predicated region
    $region38: #{mlp_forward.1} parent=1 // pred_check
      _
    $region39: #{mlp_forward.1} parent=1 // pred_check_branch
      %1431 = sbr.rel (0) target = $region41
    $region40: #{mlp_forward.1} parent=1 // pred_region
      %s1433 = ssub.s32 128, 128
      %1434 = vsyncadd [#allocation3], %s1433
      %s1436 = sshll.u32 [#allocation2], 4
      %s1437 = int_to_ptr.vmem [resolvable:$true] %s1436
      %1439 = dma.vmem_to_hbm [thread:$0]  %s1437, 128, %s9, [#allocation3]
    $region41: #{mlp_forward.1} parent=1 // pred_fallthru
      _
    // Predicated region
    $region42: #{mlp_forward.1} parent=1 // pred_check
      _
    $region43: #{mlp_forward.1} parent=1 // pred_check_branch
      %1441 = sbr.rel (0) target = $region45
    $region44: #{mlp_forward.1} parent=1 // pred_region
      %1442 = dma.done [#allocation3], 128
    $region45: #{mlp_forward.1} parent=1 // pred_fallthru
      _
    %1443 = vsyncpa [#allocation3], 1

</llo_original>
